<compile_context>
chip_gen: v6e
topology: v6e:2x2x1
jax: 0.10.0
libtpu: 0.0.40
codegen_flags: <defaults>
</compile_context>

<pallas_src>
import functools

import jax
import jax.numpy as jnp
from jax.experimental import pallas as pl
from jax.experimental.pallas import tpu as pltpu


def _round_up(x, m):
    return ((x + m - 1) // m) * m


# ----------------------------------------------------------------------------
# Pallas kernel: the whole VariationalGCNEncoder forward, fused
# ----------------------------------------------------------------------------
def fused_vgcn_kernel(a_ref, x_ref, *refs, num_layers, use_bn, eps, n_valid,
                      hid_pad, head_pad, agg_first):
    """refs = [w_0, ..., w_{L-1}, w_heads, vecs, o_ref].

    a_ref, x_ref, w_* : bf16 (MXU operands)         vecs : packed f32 rows
    vecs rows: [b_0, gamma_0, beta_0, b_1, ..., beta_{L-1}, b_heads]
    """
    o_ref = refs[-1]
    vecs_ref = refs[-2]
    w_refs = refs[:-2]                      # num_layers layer weights + head weight

    a_bf = a_ref[...]                       # bf16, DMA'd once, reused everywhere
    vecs = vecs_ref[...]                    # small packed f32 slab
    n_pad = a_ref.shape[0]

    # Node-validity mask: batch-norm statistics are over the real N nodes only.
    node_mask = (jax.lax.broadcasted_iota(jnp.int32, (n_pad, 1), 0)
                 < n_valid).astype(jnp.float32)
    inv_n = 1.0 / float(n_valid)

    h = x_ref[...]                          # bf16 activation carried layer-to-layer

    for layer in range(num_layers):
        w = w_refs[layer][...]              # bf16 [f_in_pad, hid_pad]
        b = vecs[3 * layer, :hid_pad][None, :]

        if agg_first[layer]:
            # (A_hat @ H) @ W : contract the N x N matmul against the narrower dim
            ah = jnp.dot(a_bf, h, preferred_element_type=jnp.float32)
            hf = jnp.dot(ah.astype(jnp.bfloat16), w,
                         preferred_element_type=jnp.float32)
        else:
            # A_hat @ (H @ W)
            hw = jnp.dot(h, w, preferred_element_type=jnp.float32)
            hf = jnp.dot(a_bf, hw.astype(jnp.bfloat16),
                         preferred_element_type=jnp.float32)
        hf = hf + b                          # f32 bias broadcast over nodes

        if use_bn:
            gamma = vecs[3 * layer + 1, :hid_pad][None, :]
            beta = vecs[3 * layer + 2, :hid_pad][None, :]
            # training-mode batch statistics over real nodes, biased variance
            mean = jnp.sum(hf * node_mask, axis=0, keepdims=True) * inv_n
            d = (hf - mean) * node_mask
            var = jnp.sum(d * d, axis=0, keepdims=True) * inv_n
            # fold the BN affine into one per-column scale/shift
            scale = gamma * jax.lax.rsqrt(var + eps)      # EUP rsqrt, per column
            shift = beta - mean * scale
            hf = hf * scale + shift

        # ReLU + downcast once; dropout p = 0.0 -> identity
        h = jnp.maximum(hf, 0.0).astype(jnp.bfloat16)

    # Fused mu|logstd heads: one shared A_hat aggregation, [hid_pad, head_pad] W.
    w_heads = w_refs[num_layers][...]
    b_heads = vecs[3 * num_layers, :head_pad][None, :]
    if agg_first[num_layers]:
        ah = jnp.dot(a_bf, h, preferred_element_type=jnp.float32)
        out = jnp.dot(ah.astype(jnp.bfloat16), w_heads,
                      preferred_element_type=jnp.float32)
    else:
        hw = jnp.dot(h, w_heads, preferred_element_type=jnp.float32)
        out = jnp.dot(a_bf, hw.astype(jnp.bfloat16),
                      preferred_element_type=jnp.float32)
    o_ref[...] = (out + b_heads).astype(o_ref.dtype)


# ----------------------------------------------------------------------------
# Wrapper: lane-dense padded bf16 operands, one fused pallas_call
# ----------------------------------------------------------------------------
def variational_gcn_encoder(params, x, a_hat_pad_bf16, num_nodes, *,
                            use_batch_norm, eps=1e-5):
    """a_hat_pad_bf16: [n_pad, n_pad] bf16 normalized adjacency, already padded."""
    n = num_nodes
    n_pad = a_hat_pad_bf16.shape[0]
    in_ch = x.shape[1]
    num_layers = len(params["convs"])
    hidden = params["convs"][0]["w"].shape[1]
    out_ch = params["mu"]["w"].shape[1]

    in_pad = _round_up(in_ch, 128)
    hid_pad = _round_up(hidden, 128)
    head_pad = _round_up(2 * out_ch, 128)
    vec_pad = max(hid_pad, head_pad)

    # Lane-dense, MXU-friendly padded operands (zeros in padding rows/cols).
    x_p = jnp.pad(x, ((0, n_pad - n), (0, in_pad - in_ch))).astype(jnp.bfloat16)

    inputs = [a_hat_pad_bf16, x_p]

    # Layer weights (bf16).
    f_in_pad = in_pad
    dims_pad = []
    for conv in params["convs"]:
        f_in, f_out = conv["w"].shape
        inputs.append(jnp.pad(conv["w"],
                              ((0, f_in_pad - f_in), (0, hid_pad - f_out))
                              ).astype(jnp.bfloat16))
        dims_pad.append((f_in_pad, hid_pad))
        f_in_pad = hid_pad

    # Fused mu|logstd head weight (bf16).
    w_heads = jnp.concatenate([params["mu"]["w"], params["logstd"]["w"]], axis=1)
    inputs.append(jnp.pad(w_heads,
                          ((0, hid_pad - hidden), (0, head_pad - 2 * out_ch))
                          ).astype(jnp.bfloat16))
    dims_pad.append((hid_pad, head_pad))

    # Pack all tiny per-column vectors into one f32 slab (one DMA, one buffer).
    rows = []
    for conv, bn in zip(params["convs"], params["bns"]):
        f_out = conv["w"].shape[1]
        rows.append(jnp.pad(conv["b"], (0, vec_pad - f_out)))
        rows.append(jnp.pad(bn["gamma"], (0, vec_pad - f_out), constant_values=1.0))
        rows.append(jnp.pad(bn["beta"], (0, vec_pad - f_out)))
    b_heads = jnp.concatenate([params["mu"]["b"], params["logstd"]["b"]], axis=0)
    rows.append(jnp.pad(b_heads, (0, vec_pad - 2 * out_ch)))
    vecs = jnp.stack(rows, axis=0).astype(jnp.float32)     # [3L+1, vec_pad]
    inputs.append(vecs)

    # Association choice per matmul, decided on PADDED dims.
    agg_first = tuple(bool(fo > fi) for (fi, fo) in dims_pad)

    # Advisory cost estimate (bf16 input bytes, padded-dim flops).
    flops = 0
    for (fi, fo), af in zip(dims_pad, agg_first):
        if af:
            flops += 2 * n_pad * n_pad * fi + 2 * n_pad * fi * fo
        else:
            flops += 2 * n_pad * fi * fo + 2 * n_pad * n_pad * fo
    out_bytes = n_pad * head_pad * 4
    data_bytes = sum(int(v.size) * v.dtype.itemsize for v in inputs)
    transcendentals = num_layers * hid_pad if use_batch_norm else 0
    cost = pl.CostEstimate(flops=int(flops),
                           transcendentals=int(transcendentals),
                           bytes_accessed=int(data_bytes + out_bytes))

    # Generation-aware VMEM limit: size from the actual resident footprint,
    # cap at 7/8 of physical VMEM (v7x: 56 MiB, v6e/v5e: 112 MiB).
    try:
        vmem_cap = int(pltpu.get_tpu_info().vmem_capacity_bytes)
    except Exception:
        vmem_cap = 64 * 1024 * 1024
    # headroom for in-kernel f32 temporaries (a few n_pad x max-width slabs)
    temp_bytes = 4 * n_pad * max(in_pad, hid_pad, head_pad) * 4
    needed = data_bytes + out_bytes + temp_bytes
    vmem_limit = min(int(vmem_cap * 7 // 8),
                     max(32 * 1024 * 1024, needed + needed // 2))

    kernel = functools.partial(
        fused_vgcn_kernel, num_layers=num_layers, use_bn=use_batch_norm,
        eps=eps, n_valid=n, hid_pad=hid_pad, head_pad=head_pad,
        agg_first=agg_first)

    vmem = pl.BlockSpec(memory_space=pltpu.MemorySpace.VMEM)
    out = pl.pallas_call(
        kernel,
        out_shape=jax.ShapeDtypeStruct((n_pad, head_pad), jnp.float32),
        in_specs=[vmem] * len(inputs),
        out_specs=vmem,
        cost_estimate=cost,
        compiler_params=pltpu.CompilerParams(vmem_limit_bytes=vmem_limit),
    )(*inputs)

    mu = out[:n, :out_ch]
    logstd = out[:n, out_ch:2 * out_ch]
    return mu, logstd


# ----------------------------------------------------------------------------
# Glue: dense symmetric-normalized adjacency, built DIRECTLY at padded size.
# Duplicate edges sum; self-loops added only on real nodes.
# NOTE: a node with an explicit self-loop in edge_index ends up with weight 2
# (PyG add_remaining_self_loops would keep it at 1); the reference below uses
# the same A_hat, so forward semantics are consistent within this script.
# ----------------------------------------------------------------------------
def build_normalized_adjacency_padded(edge_index, num_nodes, n_pad=None):
    if n_pad is None:
        n_pad = _round_up(num_nodes, 128)
    src = edge_index[0]
    dst = edge_index[1]
    a = jnp.zeros((n_pad, n_pad), dtype=jnp.float32)
    a = a.at[dst, src].add(1.0)                      # message flows source -> target
    diag = (jnp.arange(n_pad) < num_nodes).astype(jnp.float32)
    a = a + jnp.diag(diag)                           # self-loops on real nodes only
    deg = jnp.sum(a, axis=1)
    dinv = jnp.where(deg > 0, jax.lax.rsqrt(deg), 0.0)
    return dinv[:, None] * a * dinv[None, :]         # f32, padded rows/cols are zero


# ----------------------------------------------------------------------------
# Parameter init (deterministic, glorot-uniform like PyG GCNConv)
# ----------------------------------------------------------------------------
def glorot(key, fan_in, fan_out):
    limit = jnp.sqrt(6.0 / (fan_in + fan_out))
    return jax.random.uniform(key, (fan_in, fan_out), jnp.float32, -limit, limit)


def init_params(key, in_channels, hidden_channels, out_channels, num_layers):
    params = {"convs": [], "bns": []}
    dims = [in_channels] + [hidden_channels] * num_layers
    for i in range(num_layers):
        key, wk = jax.random.split(key)
        params["convs"].append({
            "w": glorot(wk, dims[i], dims[i + 1]),
            "b": jnp.zeros((dims[i + 1],), jnp.float32),
        })
        params["bns"].append({
            "gamma": jnp.ones((dims[i + 1],), jnp.float32),
            "beta": jnp.zeros((dims[i + 1],), jnp.float32),
        })
    key, k_mu, k_ls = jax.random.split(key, 3)
    params["mu"] = {"w": glorot(k_mu, hidden_channels, out_channels),
                    "b": jnp.zeros((out_channels,), jnp.float32)}
    params["logstd"] = {"w": glorot(k_ls, hidden_channels, out_channels),
                        "b": jnp.zeros((out_channels,), jnp.float32)}
    return params


# ----------------------------------------------------------------------------
# Pure-JAX f32 reference (for sanity check)
# ----------------------------------------------------------------------------
def reference_forward(params, x, a_hat, *, use_batch_norm, eps=1e-5):
    h = x
    for conv, bn in zip(params["convs"], params["bns"]):
        h = a_hat @ (h @ conv["w"]) + conv["b"][None, :]
        if use_batch_norm:
            mean = jnp.mean(h, axis=0, keepdims=True)
            var = jnp.mean((h - mean) ** 2, axis=0, keepdims=True)
            h = (h - mean) / jnp.sqrt(var + eps)
            h = h * bn["gamma"][None, :] + bn["beta"][None, :]
        h = jnp.maximum(h, 0.0)
    mu = a_hat @ (h @ params["mu"]["w"]) + params["mu"]["b"][None, :]
    logstd = a_hat @ (h @ params["logstd"]["w"]) + params["logstd"]["b"][None, :]
    return mu, logstd


if __name__ == "__main__":
    # Small, TPU-friendly shapes consistent with the module.
    num_nodes = 64
    in_channels = 16
    hidden_channels = 32
    out_channels = 8
    num_layers = 2
    num_edges = 256
    use_batch_norm = True      # training-mode batch statistics
    dropout = 0.0              # p=0.0 -> dropout is identity (deterministic)

    key = jax.random.PRNGKey(0)
    k_x, k_src, k_dst, k_param = jax.random.split(key, 4)

    x = jax.random.normal(k_x, (num_nodes, in_channels), jnp.float32)
    src = jax.random.randint(k_src, (num_edges,), 0, num_nodes)
    dst = jax.random.randint(k_dst, (num_edges,), 0, num_nodes)
    edge_index = jnp.stack([src, dst], axis=0)              # [2, E]

    # Build A_hat once, directly at padded size; f32 for the reference,
    # bf16 for the kernel (no extra O(N^2) pad round-trip).
    a_hat_pad_f32 = build_normalized_adjacency_padded(edge_index, num_nodes)
    a_hat_pad_bf16 = a_hat_pad_f32.astype(jnp.bfloat16)

    params = init_params(k_param, in_channels, hidden_channels,
                         out_channels, num_layers)

    mu, logstd = variational_gcn_encoder(params, x, a_hat_pad_bf16, num_nodes,
                                         use_batch_norm=use_batch_norm)
    mu = jax.block_until_ready(mu)
    logstd = jax.block_until_ready(logstd)

    a_hat_ref = a_hat_pad_f32[:num_nodes, :num_nodes]
    mu_ref, logstd_ref = reference_forward(params, x, a_hat_ref,
                                           use_batch_norm=use_batch_norm)
    assert mu.shape == (num_nodes, out_channels)
    assert logstd.shape == (num_nodes, out_channels)
    # bf16 MXU operands with f32 accumulation -> loosened tolerance vs f32 ref.
    assert jnp.allclose(mu, mu_ref, atol=5e-2, rtol=5e-2)
    assert jnp.allclose(logstd, logstd_ref, atol=5e-2, rtol=5e-2)

    print("KERNEL_OK")
</pallas_src>

<mosaic_0001>
module attributes {stable_mosaic.version = 11 : i64} {
  func.func @fused_vgcn_kernel(%arg0: memref<128x128xbf16, #tpu.memory_space<vmem>>, %arg1: memref<128x128xbf16, #tpu.memory_space<vmem>>, %arg2: memref<128x128xbf16, #tpu.memory_space<vmem>>, %arg3: memref<128x128xbf16, #tpu.memory_space<vmem>>, %arg4: memref<128x128xbf16, #tpu.memory_space<vmem>>, %arg5: memref<7x128xf32, #tpu.memory_space<vmem>>, %arg6: memref<128x128xf32, #tpu.memory_space<vmem>>) attributes {dimension_semantics = [], scalar_prefetch = 0 : i64, scratch_operands = 0 : i64, tpu.core_type = #tpu.core_type<tc>} {
    %c0 = arith.constant 0 : index
    %c0_0 = arith.constant 0 : index
    %0 = vector.load %arg0[%c0, %c0_0] : memref<128x128xbf16, #tpu.memory_space<vmem>>, vector<128x128xbf16>
    %c0_1 = arith.constant 0 : index
    %c0_2 = arith.constant 0 : index
    %1 = vector.load %arg5[%c0_1, %c0_2] : memref<7x128xf32, #tpu.memory_space<vmem>>, vector<7x128xf32>
    %2 = tpu.iota {dimensions = array<i32: 0>} : vector<128x1xi32>
    %c64_i32 = arith.constant 64 : i32
    %3 = vector.broadcast %c64_i32 : i32 to vector<128x1xi32>
    %4 = arith.cmpi slt, %2, %3 : vector<128x1xi32>
    %5 = arith.extui %4 : vector<128x1xi1> to vector<128x1xi32>
    %6 = arith.sitofp %5 : vector<128x1xi32> to vector<128x1xf32>
    %c0_3 = arith.constant 0 : index
    %c0_4 = arith.constant 0 : index
    %7 = vector.load %arg1[%c0_3, %c0_4] : memref<128x128xbf16, #tpu.memory_space<vmem>>, vector<128x128xbf16>
    %c0_5 = arith.constant 0 : index
    %c0_6 = arith.constant 0 : index
    %8 = vector.load %arg2[%c0_5, %c0_6] : memref<128x128xbf16, #tpu.memory_space<vmem>>, vector<128x128xbf16>
    %9 = vector.extract_strided_slice %1 {offsets = [0, 0], sizes = [1, 128], strides = [1, 1]} : vector<7x128xf32> to vector<1x128xf32>
    %10 = vector.shape_cast %9 : vector<1x128xf32> to vector<128xf32>
    %11 = vector.shape_cast %10 : vector<128xf32> to vector<1x128xf32>
    %cst = arith.constant dense<0.000000e+00> : vector<128x128xf32>
    %12 = tpu.matmul %7, %8, %cst {dimension_numbers = #tpu.dot_dimension_numbers<[1], [0], [0], [1], [0, 0, 1, 1], [], []>} : vector<128x128xbf16>, vector<128x128xbf16>, vector<128x128xf32> -> vector<128x128xf32>
    %13 = arith.truncf %12 : vector<128x128xf32> to vector<128x128xbf16>
    %cst_7 = arith.constant dense<0.000000e+00> : vector<128x128xf32>
    %14 = tpu.matmul %0, %13, %cst_7 {dimension_numbers = #tpu.dot_dimension_numbers<[1], [0], [0], [1], [0, 0, 1, 1], [], []>} : vector<128x128xbf16>, vector<128x128xbf16>, vector<128x128xf32> -> vector<128x128xf32>
    %15 = vector.broadcast %11 : vector<1x128xf32> to vector<128x128xf32>
    %16 = arith.addf %14, %15 : vector<128x128xf32>
    %17 = vector.extract_strided_slice %1 {offsets = [1, 0], sizes = [1, 128], strides = [1, 1]} : vector<7x128xf32> to vector<1x128xf32>
    %18 = vector.shape_cast %17 : vector<1x128xf32> to vector<128xf32>
    %19 = vector.shape_cast %18 : vector<128xf32> to vector<1x128xf32>
    %20 = vector.extract_strided_slice %1 {offsets = [2, 0], sizes = [1, 128], strides = [1, 1]} : vector<7x128xf32> to vector<1x128xf32>
    %21 = vector.shape_cast %20 : vector<1x128xf32> to vector<128xf32>
    %22 = vector.shape_cast %21 : vector<128xf32> to vector<1x128xf32>
    %23 = vector.broadcast %6 : vector<128x1xf32> to vector<128x128xf32>
    %24 = arith.mulf %16, %23 : vector<128x128xf32>
    %cst_8 = arith.constant dense<0.000000e+00> : vector<128xf32>
    %25 = vector.multi_reduction <add>, %24, %cst_8 [0] : vector<128x128xf32> to vector<128xf32>
    %26 = vector.shape_cast %25 : vector<128xf32> to vector<1x128xf32>
    %cst_9 = arith.constant 1.562500e-02 : f32
    %27 = vector.broadcast %cst_9 : f32 to vector<1x128xf32>
    %28 = arith.mulf %26, %27 : vector<1x128xf32>
    %29 = vector.broadcast %28 : vector<1x128xf32> to vector<128x128xf32>
    %30 = arith.subf %16, %29 : vector<128x128xf32>
    %31 = vector.broadcast %6 : vector<128x1xf32> to vector<128x128xf32>
    %32 = arith.mulf %30, %31 : vector<128x128xf32>
    %33 = arith.mulf %32, %32 : vector<128x128xf32>
    %cst_10 = arith.constant dense<0.000000e+00> : vector<128xf32>
    %34 = vector.multi_reduction <add>, %33, %cst_10 [0] : vector<128x128xf32> to vector<128xf32>
    %35 = vector.shape_cast %34 : vector<128xf32> to vector<1x128xf32>
    %cst_11 = arith.constant 1.562500e-02 : f32
    %36 = vector.broadcast %cst_11 : f32 to vector<1x128xf32>
    %37 = arith.mulf %35, %36 : vector<1x128xf32>
    %cst_12 = arith.constant 9.99999974E-6 : f32
    %38 = vector.broadcast %cst_12 : f32 to vector<1x128xf32>
    %39 = arith.addf %37, %38 : vector<1x128xf32>
    %40 = math.rsqrt %39 : vector<1x128xf32>
    %41 = arith.mulf %19, %40 : vector<1x128xf32>
    %42 = arith.mulf %28, %41 : vector<1x128xf32>
    %43 = arith.subf %22, %42 : vector<1x128xf32>
    %44 = vector.broadcast %41 : vector<1x128xf32> to vector<128x128xf32>
    %45 = arith.mulf %16, %44 : vector<128x128xf32>
    %46 = vector.broadcast %43 : vector<1x128xf32> to vector<128x128xf32>
    %47 = arith.addf %45, %46 : vector<128x128xf32>
    %cst_13 = arith.constant 0.000000e+00 : f32
    %48 = vector.broadcast %cst_13 : f32 to vector<128x128xf32>
    %49 = arith.maximumf %47, %48 : vector<128x128xf32>
    %50 = arith.truncf %49 : vector<128x128xf32> to vector<128x128xbf16>
    %c0_14 = arith.constant 0 : index
    %c0_15 = arith.constant 0 : index
    %51 = vector.load %arg3[%c0_14, %c0_15] : memref<128x128xbf16, #tpu.memory_space<vmem>>, vector<128x128xbf16>
    %52 = vector.extract_strided_slice %1 {offsets = [3, 0], sizes = [1, 128], strides = [1, 1]} : vector<7x128xf32> to vector<1x128xf32>
    %53 = vector.shape_cast %52 : vector<1x128xf32> to vector<128xf32>
    %54 = vector.shape_cast %53 : vector<128xf32> to vector<1x128xf32>
    %cst_16 = arith.constant dense<0.000000e+00> : vector<128x128xf32>
    %55 = tpu.matmul %50, %51, %cst_16 {dimension_numbers = #tpu.dot_dimension_numbers<[1], [0], [0], [1], [0, 0, 1, 1], [], []>} : vector<128x128xbf16>, vector<128x128xbf16>, vector<128x128xf32> -> vector<128x128xf32>
    %56 = arith.truncf %55 : vector<128x128xf32> to vector<128x128xbf16>
    %cst_17 = arith.constant dense<0.000000e+00> : vector<128x128xf32>
    %57 = tpu.matmul %0, %56, %cst_17 {dimension_numbers = #tpu.dot_dimension_numbers<[1], [0], [0], [1], [0, 0, 1, 1], [], []>} : vector<128x128xbf16>, vector<128x128xbf16>, vector<128x128xf32> -> vector<128x128xf32>
    %58 = vector.broadcast %54 : vector<1x128xf32> to vector<128x128xf32>
    %59 = arith.addf %57, %58 : vector<128x128xf32>
    %60 = vector.extract_strided_slice %1 {offsets = [4, 0], sizes = [1, 128], strides = [1, 1]} : vector<7x128xf32> to vector<1x128xf32>
    %61 = vector.shape_cast %60 : vector<1x128xf32> to vector<128xf32>
    %62 = vector.shape_cast %61 : vector<128xf32> to vector<1x128xf32>
    %63 = vector.extract_strided_slice %1 {offsets = [5, 0], sizes = [1, 128], strides = [1, 1]} : vector<7x128xf32> to vector<1x128xf32>
    %64 = vector.shape_cast %63 : vector<1x128xf32> to vector<128xf32>
    %65 = vector.shape_cast %64 : vector<128xf32> to vector<1x128xf32>
    %66 = vector.broadcast %6 : vector<128x1xf32> to vector<128x128xf32>
    %67 = arith.mulf %59, %66 : vector<128x128xf32>
    %cst_18 = arith.constant dense<0.000000e+00> : vector<128xf32>
    %68 = vector.multi_reduction <add>, %67, %cst_18 [0] : vector<128x128xf32> to vector<128xf32>
    %69 = vector.shape_cast %68 : vector<128xf32> to vector<1x128xf32>
    %cst_19 = arith.constant 1.562500e-02 : f32
    %70 = vector.broadcast %cst_19 : f32 to vector<1x128xf32>
    %71 = arith.mulf %69, %70 : vector<1x128xf32>
    %72 = vector.broadcast %71 : vector<1x128xf32> to vector<128x128xf32>
    %73 = arith.subf %59, %72 : vector<128x128xf32>
    %74 = vector.broadcast %6 : vector<128x1xf32> to vector<128x128xf32>
    %75 = arith.mulf %73, %74 : vector<128x128xf32>
    %76 = arith.mulf %75, %75 : vector<128x128xf32>
    %cst_20 = arith.constant dense<0.000000e+00> : vector<128xf32>
    %77 = vector.multi_reduction <add>, %76, %cst_20 [0] : vector<128x128xf32> to vector<128xf32>
    %78 = vector.shape_cast %77 : vector<128xf32> to vector<1x128xf32>
    %cst_21 = arith.constant 1.562500e-02 : f32
    %79 = vector.broadcast %cst_21 : f32 to vector<1x128xf32>
    %80 = arith.mulf %78, %79 : vector<1x128xf32>
    %cst_22 = arith.constant 9.99999974E-6 : f32
    %81 = vector.broadcast %cst_22 : f32 to vector<1x128xf32>
    %82 = arith.addf %80, %81 : vector<1x128xf32>
    %83 = math.rsqrt %82 : vector<1x128xf32>
    %84 = arith.mulf %62, %83 : vector<1x128xf32>
    %85 = arith.mulf %71, %84 : vector<1x128xf32>
    %86 = arith.subf %65, %85 : vector<1x128xf32>
    %87 = vector.broadcast %84 : vector<1x128xf32> to vector<128x128xf32>
    %88 = arith.mulf %59, %87 : vector<128x128xf32>
    %89 = vector.broadcast %86 : vector<1x128xf32> to vector<128x128xf32>
    %90 = arith.addf %88, %89 : vector<128x128xf32>
    %cst_23 = arith.constant 0.000000e+00 : f32
    %91 = vector.broadcast %cst_23 : f32 to vector<128x128xf32>
    %92 = arith.maximumf %90, %91 : vector<128x128xf32>
    %93 = arith.truncf %92 : vector<128x128xf32> to vector<128x128xbf16>
    %c0_24 = arith.constant 0 : index
    %c0_25 = arith.constant 0 : index
    %94 = vector.load %arg4[%c0_24, %c0_25] : memref<128x128xbf16, #tpu.memory_space<vmem>>, vector<128x128xbf16>
    %95 = vector.extract_strided_slice %1 {offsets = [6, 0], sizes = [1, 128], strides = [1, 1]} : vector<7x128xf32> to vector<1x128xf32>
    %96 = vector.shape_cast %95 : vector<1x128xf32> to vector<128xf32>
    %97 = vector.shape_cast %96 : vector<128xf32> to vector<1x128xf32>
    %cst_26 = arith.constant dense<0.000000e+00> : vector<128x128xf32>
    %98 = tpu.matmul %93, %94, %cst_26 {dimension_numbers = #tpu.dot_dimension_numbers<[1], [0], [0], [1], [0, 0, 1, 1], [], []>} : vector<128x128xbf16>, vector<128x128xbf16>, vector<128x128xf32> -> vector<128x128xf32>
    %99 = arith.truncf %98 : vector<128x128xf32> to vector<128x128xbf16>
    %cst_27 = arith.constant dense<0.000000e+00> : vector<128x128xf32>
    %100 = tpu.matmul %0, %99, %cst_27 {dimension_numbers = #tpu.dot_dimension_numbers<[1], [0], [0], [1], [0, 0, 1, 1], [], []>} : vector<128x128xbf16>, vector<128x128xbf16>, vector<128x128xf32> -> vector<128x128xf32>
    %101 = vector.broadcast %97 : vector<1x128xf32> to vector<128x128xf32>
    %102 = arith.addf %100, %101 : vector<128x128xf32>
    %c0_28 = arith.constant 0 : index
    %c0_29 = arith.constant 0 : index
    %103 = vector.load %arg6[%c0_28, %c0_29] : memref<128x128xf32, #tpu.memory_space<vmem>>, vector<128x128xf32>
    tpu.vector_store %arg6[%c0_28, %c0_29], %102 {strides = array<i32>} : memref<128x128xf32, #tpu.memory_space<vmem>>, vector<128x128xf32>,
    return
  }
}

</mosaic_0001>

<llo_original>
// kernel: tpu_custom_call.1
$region0: #{tpu_custom_call.1}
  #allocation0 [shape = 'u32[]', space=smem, size = 0x4, offset = 0x4, fixed_abs, tag = 'smem constant byte address 0x4 - core index']
  #allocation1 [shape = 'u32[144,128]{1,0:T(1,128)}', space=vmem, size = 0x12000, scoped, tag = 'internal scratch']
  %s0 = inlined_call_operand.hbm [shape: bf16[128,128], index: 0, kind: input, shape index: {}]
  %s1 = inlined_call_operand.hbm [shape: bf16[128,128], index: 1, kind: input, shape index: {}]
  %s2 = inlined_call_operand.hbm [shape: bf16[128,128], index: 2, kind: input, shape index: {}]
  %s3 = inlined_call_operand.hbm [shape: bf16[128,128], index: 3, kind: input, shape index: {}]
  %s4 = inlined_call_operand.hbm [shape: bf16[128,128], index: 4, kind: input, shape index: {}]
  %s5 = inlined_call_operand.vmem [shape: f32[7,128], index: 5, kind: input, shape index: {}]
  %s6 = inlined_call_operand.hbm [shape: f32[128,128], index: 6, kind: output, shape index: {}]
  %s7 = sld [smem:[#allocation0]]
  $region54: #{tpu_custom_call.1} parent=0
    _
  %s9 = ssub.s32 1, %s7
  %s10 = scalar_select 0, %s9, %s7
  $region1: #{tpu_custom_call.1} parent=0
    #allocation2 [shape = 'u8[32768]{0}', space=vmem, size = 0x8000, scoped, tag = 'input window, operand 0, single buffered']
    #allocation3 [shape = 's32[1]{0}', space=sflag, size = 0x4, scoped, tag = 'scoped memory for tpu_custom_call.1']
    #allocation4 [shape = 's32[1]{0}', space=sflag, size = 0x4, scoped, tag = 'scoped memory for tpu_custom_call.1']
    #allocation5 [shape = 'u8[32768]{0}', space=vmem, size = 0x8000, scoped, tag = 'input window, operand 1, single buffered']
    #allocation6 [shape = 's32[1]{0}', space=sflag, size = 0x4, scoped, tag = 'scoped memory for tpu_custom_call.1']
    #allocation7 [shape = 'u8[32768]{0}', space=vmem, size = 0x8000, scoped, tag = 'input window, operand 2, single buffered']
    #allocation8 [shape = 'u8[32768]{0}', space=vmem, size = 0x8000, scoped, tag = 'input window, operand 3, single buffered']
    #allocation9 [shape = 's32[1]{0}', space=sflag, size = 0x4, scoped, tag = 'scoped memory for tpu_custom_call.1']
    #allocation10 [shape = 'u8[32768]{0}', space=vmem, size = 0x8000, scoped, tag = 'input window, operand 4, single buffered']
    #allocation11 [shape = 'u8[65536]{0}', space=vmem, size = 0x10000, scoped, tag = 'output window, operand 0, single buffered']
    %11 = vsyncpa [#allocation3], 0
    %12 = vsyncpa [#allocation6], 0
    %13 = vsyncpa [#allocation9], 0
    %14 = vsyncpa [#allocation4], 0
    // Predicated region
    $region2: #{tpu_custom_call.1} parent=1 // pred_check
      _
    $region3: #{tpu_custom_call.1} parent=1 // pred_check_branch
      %16 = sbr.rel (0) target = $region5
    $region4: #{tpu_custom_call.1} parent=1 // pred_region
      %s18 = ssub.s32 1024, 1024
      %19 = vsyncadd [#allocation3], %s18
      %s20 = sshll.u32 [#allocation2], 4
      %s21 = int_to_ptr.vmem [resolvable:$true] %s20
      %26 = dma.hbm_to_vmem [thread:$0]  %s0, 1024, %s21, [#allocation3], 64, 64, 4
    $region5: #{tpu_custom_call.1} parent=1 // pred_fallthru
      _
    // Predicated region
    $region6: #{tpu_custom_call.1} parent=1 // pred_check
      _
    $region7: #{tpu_custom_call.1} parent=1 // pred_check_branch
      %28 = sbr.rel (0) target = $region9
    $region8: #{tpu_custom_call.1} parent=1 // pred_region
      %s30 = ssub.s32 1024, 1024
      %31 = vsyncadd [#allocation6], %s30
      %s32 = sshll.u32 [#allocation5], 4
      %s33 = int_to_ptr.vmem [resolvable:$true] %s32
      %38 = dma.hbm_to_vmem [thread:$0]  %s1, 1024, %s33, [#allocation6], 64, 64, 4
    $region9: #{tpu_custom_call.1} parent=1 // pred_fallthru
      _
    // Predicated region
    $region10: #{tpu_custom_call.1} parent=1 // pred_check
      _
    $region11: #{tpu_custom_call.1} parent=1 // pred_check_branch
      %40 = sbr.rel (0) target = $region13
    $region12: #{tpu_custom_call.1} parent=1 // pred_region
      %s42 = ssub.s32 1024, 1024
      %43 = vsyncadd [#allocation6], %s42
      %s44 = sshll.u32 [#allocation7], 4
      %s45 = int_to_ptr.vmem [resolvable:$true] %s44
      %50 = dma.hbm_to_vmem [thread:$0]  %s2, 1024, %s45, [#allocation6], 64, 64, 4
    $region13: #{tpu_custom_call.1} parent=1 // pred_fallthru
      _
    // Predicated region
    $region14: #{tpu_custom_call.1} parent=1 // pred_check
      _
    $region15: #{tpu_custom_call.1} parent=1 // pred_check_branch
      %52 = sbr.rel (0) target = $region17
    $region16: #{tpu_custom_call.1} parent=1 // pred_region
      %s54 = ssub.s32 1024, 1024
      %55 = vsyncadd [#allocation9], %s54
      %s56 = sshll.u32 [#allocation8], 4
      %s57 = int_to_ptr.vmem [resolvable:$true] %s56
      %62 = dma.hbm_to_vmem [thread:$0]  %s3, 1024, %s57, [#allocation9], 64, 64, 4
    $region17: #{tpu_custom_call.1} parent=1 // pred_fallthru
      _
    // Predicated region
    $region18: #{tpu_custom_call.1} parent=1 // pred_check
      _
    $region19: #{tpu_custom_call.1} parent=1 // pred_check_branch
      %64 = sbr.rel (0) target = $region21
    $region20: #{tpu_custom_call.1} parent=1 // pred_region
      %s66 = ssub.s32 1024, 1024
      %67 = vsyncadd [#allocation9], %s66
      %s68 = sshll.u32 [#allocation10], 4
      %s69 = int_to_ptr.vmem [resolvable:$true] %s68
      %74 = dma.hbm_to_vmem [thread:$0]  %s4, 1024, %s69, [#allocation9], 64, 64, 4
    $region21: #{tpu_custom_call.1} parent=1 // pred_fallthru
      _
    // Predicated region
    $region22: #{tpu_custom_call.1} parent=1 // pred_check
      _
    $region23: #{tpu_custom_call.1} parent=1 // pred_check_branch
      %76 = sbr.rel (0) target = $region25
    $region24: #{tpu_custom_call.1} parent=1 // pred_region
      _
    $region25: #{tpu_custom_call.1} parent=1 // pred_fallthru
      _
    // Predicated region
    $region26: #{tpu_custom_call.1} parent=1 // pred_check
      _
    $region27: #{tpu_custom_call.1} parent=1 // pred_check_branch
      %78 = sbr.rel (0) target = $region29
    $region28: #{tpu_custom_call.1} parent=1 // pred_region
      %79 = dma.done [#allocation3], 1024
    $region29: #{tpu_custom_call.1} parent=1 // pred_fallthru
      _
    // Predicated region
    $region30: #{tpu_custom_call.1} parent=1 // pred_check
      _
    $region31: #{tpu_custom_call.1} parent=1 // pred_check_branch
      %81 = sbr.rel (0) target = $region33
    $region32: #{tpu_custom_call.1} parent=1 // pred_region
      %82 = dma.done [#allocation6], 1024
    $region33: #{tpu_custom_call.1} parent=1 // pred_fallthru
      _
    // Predicated region
    $region34: #{tpu_custom_call.1} parent=1 // pred_check
      _
    $region35: #{tpu_custom_call.1} parent=1 // pred_check_branch
      %84 = sbr.rel (0) target = $region37
    $region36: #{tpu_custom_call.1} parent=1 // pred_region
      %85 = dma.done [#allocation6], 1024
    $region37: #{tpu_custom_call.1} parent=1 // pred_fallthru
      _
    // Predicated region
    $region38: #{tpu_custom_call.1} parent=1 // pred_check
      _
    $region39: #{tpu_custom_call.1} parent=1 // pred_check_branch
      %87 = sbr.rel (0) target = $region41
    $region40: #{tpu_custom_call.1} parent=1 // pred_region
      %88 = dma.done [#allocation9], 1024
    $region41: #{tpu_custom_call.1} parent=1 // pred_fallthru
      _
    // Predicated region
    $region42: #{tpu_custom_call.1} parent=1 // pred_check
      _
    $region43: #{tpu_custom_call.1} parent=1 // pred_check_branch
      %90 = sbr.rel (0) target = $region45
    $region44: #{tpu_custom_call.1} parent=1 // pred_region
      %91 = dma.done [#allocation9], 1024
    $region45: #{tpu_custom_call.1} parent=1 // pred_fallthru
      _
    %v93 = vld [vmem:[#allocation2] sm:$0xf]
    %v94 = vld [vmem:[#allocation2 + $0x4] sm:$0xf]
    %v95 = vld [vmem:[#allocation2 + $0x8] sm:$0xf]
    %v96 = vld [vmem:[#allocation2 + $0xc] sm:$0xf]
    %v97 = vld [vmem:[#allocation2 + $0x10] sm:$0xf]
    %v98 = vld [vmem:[#allocation2 + $0x14] sm:$0xf]
    %v99 = vld [vmem:[#allocation2 + $0x18] sm:$0xf]
    %v100 = vld [vmem:[#allocation2 + $0x1c] sm:$0xf]
    %v101 = vld [vmem:[#allocation2 + $0x20] sm:$0xf]
    %v102 = vld [vmem:[#allocation2 + $0x24] sm:$0xf]
    %v103 = vld [vmem:[#allocation2 + $0x28] sm:$0xf]
    %v104 = vld [vmem:[#allocation2 + $0x2c] sm:$0xf]
    %v105 = vld [vmem:[#allocation2 + $0x30] sm:$0xf]
    %v106 = vld [vmem:[#allocation2 + $0x34] sm:$0xf]
    %v107 = vld [vmem:[#allocation2 + $0x38] sm:$0xf]
    %v108 = vld [vmem:[#allocation2 + $0x3c] sm:$0xf]
    %v109 = vld [vmem:[%s5] sm:$0x7f]
    %v110 = vlaneseq
    %v111 = vshrl.u32 %v110, 7
    %v112 = vadd.s32 %v111, 8
    %v113 = vadd.s32 %v111, 16
    %v114 = vadd.s32 %v111, 24
    %v115 = vadd.s32 %v111, 32
    %v116 = vadd.s32 %v111, 40
    %v117 = vadd.s32 %v111, 48
    %v118 = vadd.s32 %v111, 56
    %v119 = vadd.s32 %v111, 64
    %v120 = vadd.s32 %v111, 72
    %v121 = vadd.s32 %v111, 80
    %v122 = vadd.s32 %v111, 88
    %v123 = vadd.s32 %v111, 96
    %v124 = vadd.s32 %v111, 104
    %v125 = vadd.s32 %v111, 112
    %v126 = vadd.s32 %v111, 120
    %vm127 = vcmp.lt.s32.totalorder %v111, 64
    %vm128 = vcmp.lt.s32.totalorder %v112, 64
    %vm129 = vcmp.lt.s32.totalorder %v113, 64
    %vm130 = vcmp.lt.s32.totalorder %v114, 64
    %vm131 = vcmp.lt.s32.totalorder %v115, 64
    %vm132 = vcmp.lt.s32.totalorder %v116, 64
    %vm133 = vcmp.lt.s32.totalorder %v117, 64
    %vm134 = vcmp.lt.s32.totalorder %v118, 64
    %vm135 = vcmp.lt.s32.totalorder %v119, 64
    %vm136 = vcmp.lt.s32.totalorder %v120, 64
    %vm137 = vcmp.lt.s32.totalorder %v121, 64
    %vm138 = vcmp.lt.s32.totalorder %v122, 64
    %vm139 = vcmp.lt.s32.totalorder %v123, 64
    %vm140 = vcmp.lt.s32.totalorder %v124, 64
    %vm141 = vcmp.lt.s32.totalorder %v125, 64
    %vm142 = vcmp.lt.s32.totalorder %v126, 64
    %v143 = vsel %vm127, 1, 0
    %v144 = vsel %vm128, 1, 0
    %v145 = vsel %vm129, 1, 0
    %v146 = vsel %vm130, 1, 0
    %v147 = vsel %vm131, 1, 0
    %v148 = vsel %vm132, 1, 0
    %v149 = vsel %vm133, 1, 0
    %v150 = vsel %vm134, 1, 0
    %v151 = vsel %vm135, 1, 0
    %v152 = vsel %vm136, 1, 0
    %v153 = vsel %vm137, 1, 0
    %v154 = vsel %vm138, 1, 0
    %v155 = vsel %vm139, 1, 0
    %v156 = vsel %vm140, 1, 0
    %v157 = vsel %vm141, 1, 0
    %v158 = vsel %vm142, 1, 0
    %v159 = vcvt.s32.f32 %v143
    %v160 = vcvt.s32.f32 %v144
    %v161 = vcvt.s32.f32 %v145
    %v162 = vcvt.s32.f32 %v146
    %v163 = vcvt.s32.f32 %v147
    %v164 = vcvt.s32.f32 %v148
    %v165 = vcvt.s32.f32 %v149
    %v166 = vcvt.s32.f32 %v150
    %v167 = vcvt.s32.f32 %v151
    %v168 = vcvt.s32.f32 %v152
    %v169 = vcvt.s32.f32 %v153
    %v170 = vcvt.s32.f32 %v154
    %v171 = vcvt.s32.f32 %v155
    %v172 = vcvt.s32.f32 %v156
    %v173 = vcvt.s32.f32 %v157
    %v174 = vcvt.s32.f32 %v158
    %v175 = vld [vmem:[#allocation5] sm:$0xf]
    %v176 = vld [vmem:[#allocation5 + $0x4] sm:$0xf]
    %v177 = vld [vmem:[#allocation5 + $0x8] sm:$0xf]
    %v178 = vld [vmem:[#allocation5 + $0xc] sm:$0xf]
    %v179 = vld [vmem:[#allocation5 + $0x10] sm:$0xf]
    %v180 = vld [vmem:[#allocation5 + $0x14] sm:$0xf]
    %v181 = vld [vmem:[#allocation5 + $0x18] sm:$0xf]
    %v182 = vld [vmem:[#allocation5 + $0x1c] sm:$0xf]
    %v183 = vld [vmem:[#allocation5 + $0x20] sm:$0xf]
    %v184 = vld [vmem:[#allocation5 + $0x24] sm:$0xf]
    %v185 = vld [vmem:[#allocation5 + $0x28] sm:$0xf]
    %v186 = vld [vmem:[#allocation5 + $0x2c] sm:$0xf]
    %v187 = vld [vmem:[#allocation5 + $0x30] sm:$0xf]
    %v188 = vld [vmem:[#allocation5 + $0x34] sm:$0xf]
    %v189 = vld [vmem:[#allocation5 + $0x38] sm:$0xf]
    %v190 = vld [vmem:[#allocation5 + $0x3c] sm:$0xf]
    %v191 = vld [vmem:[#allocation7] sm:$0xf]
    %v192 = vld [vmem:[#allocation7 + $0x4] sm:$0xf]
    %v193 = vld [vmem:[#allocation7 + $0x8] sm:$0xf]
    %v194 = vld [vmem:[#allocation7 + $0xc] sm:$0xf]
    %v195 = vld [vmem:[#allocation7 + $0x10] sm:$0xf]
    %v196 = vld [vmem:[#allocation7 + $0x14] sm:$0xf]
    %v197 = vld [vmem:[#allocation7 + $0x18] sm:$0xf]
    %v198 = vld [vmem:[#allocation7 + $0x1c] sm:$0xf]
    %v199 = vld [vmem:[#allocation7 + $0x20] sm:$0xf]
    %v200 = vld [vmem:[#allocation7 + $0x24] sm:$0xf]
    %v201 = vld [vmem:[#allocation7 + $0x28] sm:$0xf]
    %v202 = vld [vmem:[#allocation7 + $0x2c] sm:$0xf]
    %v203 = vld [vmem:[#allocation7 + $0x30] sm:$0xf]
    %v204 = vld [vmem:[#allocation7 + $0x34] sm:$0xf]
    %v205 = vld [vmem:[#allocation7 + $0x38] sm:$0xf]
    %v206 = vld [vmem:[#allocation7 + $0x3c] sm:$0xf]
    %v223 = vunpack.c.l.b16 %v175
    %v224 = vunpack.c.l.b16 %v176
    %v225 = vunpack.c.l.b16 %v177
    %v226 = vunpack.c.l.b16 %v178
    %v227 = vunpack.c.l.b16 %v179
    %v228 = vunpack.c.l.b16 %v180
    %v229 = vunpack.c.l.b16 %v181
    %v230 = vunpack.c.l.b16 %v182
    %v231 = vunpack.c.l.b16 %v183
    %v232 = vunpack.c.l.b16 %v184
    %v233 = vunpack.c.l.b16 %v185
    %v234 = vunpack.c.l.b16 %v186
    %v235 = vunpack.c.l.b16 %v187
    %v236 = vunpack.c.l.b16 %v188
    %v237 = vunpack.c.l.b16 %v189
    %v238 = vunpack.c.l.b16 %v190
    %v239 = vpack.c.b16 %v224, %v223
    %v240 = vpack.c.b16 %v226, %v225
    %v241 = vpack.c.b16 %v228, %v227
    %v242 = vpack.c.b16 %v230, %v229
    %v243 = vpack.c.b16 %v232, %v231
    %v244 = vpack.c.b16 %v234, %v233
    %v245 = vpack.c.b16 %v236, %v235
    %v246 = vpack.c.b16 %v238, %v237
    %v271 = vunpack.c.l.b16 %v191
    %v272 = vunpack.c.l.b16 %v192
    %v273 = vunpack.c.l.b16 %v193
    %v274 = vunpack.c.l.b16 %v194
    %v275 = vunpack.c.l.b16 %v195
    %v276 = vunpack.c.l.b16 %v196
    %v277 = vunpack.c.l.b16 %v197
    %v278 = vunpack.c.l.b16 %v198
    %v279 = vunpack.c.l.b16 %v199
    %v280 = vunpack.c.l.b16 %v200
    %v281 = vunpack.c.l.b16 %v201
    %v282 = vunpack.c.l.b16 %v202
    %v283 = vunpack.c.l.b16 %v203
    %v284 = vunpack.c.l.b16 %v204
    %v285 = vunpack.c.l.b16 %v205
    %v286 = vunpack.c.l.b16 %v206
    %v287 = vpack.c.b16 %v272, %v271
    %v288 = vpack.c.b16 %v274, %v273
    %v289 = vpack.c.b16 %v276, %v275
    %v290 = vpack.c.b16 %v278, %v277
    %v291 = vpack.c.b16 %v280, %v279
    %v292 = vpack.c.b16 %v282, %v281
    %v293 = vpack.c.b16 %v284, %v283
    %v294 = vpack.c.b16 %v286, %v285
    %303 = vmatprep.subr.bf16.mxu0 0
    %304 = vmatpush1.bf16.msra.mxu0 %v294
    %305 = vmatprep.subr.bf16.mxu0 0
    %306 = vmatpush1.bf16.msra.mxu0 %v293
    %307 = vmatprep.subr.bf16.mxu0 0
    %308 = vmatpush1.bf16.msra.mxu0 %v292
    %309 = vmatprep.subr.bf16.mxu0 0
    %310 = vmatpush1.bf16.msra.mxu0 %v291
    %311 = vmatprep.subr.bf16.mxu0 0
    %312 = vmatpush1.bf16.msra.mxu0 %v290
    %313 = vmatprep.subr.bf16.mxu0 0
    %314 = vmatpush1.bf16.msra.mxu0 %v289
    %315 = vmatprep.subr.bf16.mxu0 0
    %316 = vmatpush1.bf16.msra.mxu0 %v288
    %317 = vmatprep.subr.bf16.mxu0 0
    %318 = vmatpush1.bf16.msra.mxu0 %v287
    %319 = vmatprep.subr.bf16.mxu0 0
    %320 = vmatpush2.bf16.msra.mxu0 0
    %321 = vmatprep.subr.bf16.mxu0 0
    %322 = vmatpush2.bf16.msra.mxu0 0
    %323 = vmatprep.subr.bf16.mxu0 0
    %324 = vmatpush2.bf16.msra.mxu0 0
    %325 = vmatprep.subr.bf16.mxu0 0
    %326 = vmatpush2.bf16.msra.mxu0 0
    %327 = vmatprep.subr.bf16.mxu0 0
    %328 = vmatpush2.bf16.msra.mxu0 0
    %329 = vmatprep.subr.bf16.mxu0 0
    %330 = vmatpush2.bf16.msra.mxu0 0
    %331 = vmatprep.subr.bf16.mxu0 0
    %332 = vmatpush2.bf16.msra.mxu0 0
    %333 = vmatprep.subr.bf16.mxu0 0
    %334 = vmatpush2.bf16.msra.mxu0 0
    %335 = vmatprep.mubr.bf16.mxu0 0
    %336 = vmatmul.mubr.bf16.gmra.mxu0 %v239
    %v337 = vpop.f32.mrf.mxu0
    %v338 = vadd.f32 0.0, %v337
    %v339 = vpop.f32.mrf.mxu0
    %v340 = vpop.f32.mrf.mxu0
    %v341 = vadd.f32 0.0, %v340
    %v342 = vpop.f32.mrf.mxu0
    %343 = vmatprep.mubr.bf16.mxu0 0
    %344 = vmatmul.mubr.bf16.gmra.mxu0 %v240
    %v345 = vpop.f32.mrf.mxu0
    %v346 = vadd.f32 0.0, %v345
    %v347 = vpop.f32.mrf.mxu0
    %v348 = vpop.f32.mrf.mxu0
    %v349 = vadd.f32 0.0, %v348
    %v350 = vpop.f32.mrf.mxu0
    %351 = vmatprep.mubr.bf16.mxu0 0
    %352 = vmatmul.mubr.bf16.gmra.mxu0 %v241
    %v353 = vpop.f32.mrf.mxu0
    %v354 = vadd.f32 0.0, %v353
    %v355 = vpop.f32.mrf.mxu0
    %v356 = vpop.f32.mrf.mxu0
    %v357 = vadd.f32 0.0, %v356
    %v358 = vpop.f32.mrf.mxu0
    %359 = vmatprep.mubr.bf16.mxu0 0
    %360 = vmatmul.mubr.bf16.gmra.mxu0 %v242
    %v361 = vpop.f32.mrf.mxu0
    %v362 = vadd.f32 0.0, %v361
    %v363 = vpop.f32.mrf.mxu0
    %v364 = vpop.f32.mrf.mxu0
    %v365 = vadd.f32 0.0, %v364
    %v366 = vpop.f32.mrf.mxu0
    %367 = vmatprep.mubr.bf16.mxu0 0
    %368 = vmatmul.mubr.bf16.gmra.mxu0 %v243
    %v369 = vpop.f32.mrf.mxu0
    %v370 = vadd.f32 0.0, %v369
    %v371 = vpop.f32.mrf.mxu0
    %v372 = vpop.f32.mrf.mxu0
    %v373 = vadd.f32 0.0, %v372
    %v374 = vpop.f32.mrf.mxu0
    %375 = vmatprep.mubr.bf16.mxu0 0
    %376 = vmatmul.mubr.bf16.gmra.mxu0 %v244
    %v377 = vpop.f32.mrf.mxu0
    %v378 = vadd.f32 0.0, %v377
    %v379 = vpop.f32.mrf.mxu0
    %v380 = vpop.f32.mrf.mxu0
    %v381 = vadd.f32 0.0, %v380
    %v382 = vpop.f32.mrf.mxu0
    %383 = vmatprep.mubr.bf16.mxu0 0
    %384 = vmatmul.mubr.bf16.gmra.mxu0 %v245
    %v385 = vpop.f32.mrf.mxu0
    %v386 = vadd.f32 0.0, %v385
    %v387 = vpop.f32.mrf.mxu0
    %v388 = vpop.f32.mrf.mxu0
    %v389 = vadd.f32 0.0, %v388
    %v390 = vpop.f32.mrf.mxu0
    %391 = vmatprep.mubr.bf16.mxu0 0
    %392 = vmatmul.mubr.bf16.gmra.mxu0 %v246
    %v393 = vpop.f32.mrf.mxu0
    %v394 = vadd.f32 0.0, %v393
    %v395 = vpop.f32.mrf.mxu0
    %v396 = vpop.f32.mrf.mxu0
    %v397 = vadd.f32 0.0, %v396
    %v398 = vpop.f32.mrf.mxu0
    %399 = vdwg.mxu0
    %v400 = vpack.c.bf16 %v341, %v338
    %v401 = vpack.c.bf16 %v349, %v346
    %v402 = vpack.c.bf16 %v357, %v354
    %v403 = vpack.c.bf16 %v365, %v362
    %v404 = vpack.c.bf16 %v373, %v370
    %v405 = vpack.c.bf16 %v381, %v378
    %v406 = vpack.c.bf16 %v389, %v386
    %v407 = vpack.c.bf16 %v397, %v394
    %v408 = vlaneseq
    %v409 = vshrl.u32 %v408, 7
    %v410 = vsub.s32 0, %v409
    %v411 = vrot.slane %v109, %v410
    %v428 = vunpack.c.l.b16 %v93
    %v429 = vunpack.c.l.b16 %v94
    %v430 = vunpack.c.l.b16 %v95
    %v431 = vunpack.c.l.b16 %v96
    %v432 = vunpack.c.l.b16 %v97
    %v433 = vunpack.c.l.b16 %v98
    %v434 = vunpack.c.l.b16 %v99
    %v435 = vunpack.c.l.b16 %v100
    %v436 = vunpack.c.l.b16 %v101
    %v437 = vunpack.c.l.b16 %v102
    %v438 = vunpack.c.l.b16 %v103
    %v439 = vunpack.c.l.b16 %v104
    %v440 = vunpack.c.l.b16 %v105
    %v441 = vunpack.c.l.b16 %v106
    %v442 = vunpack.c.l.b16 %v107
    %v443 = vunpack.c.l.b16 %v108
    %v444 = vpack.c.b16 %v429, %v428
    %v445 = vpack.c.b16 %v431, %v430
    %v446 = vpack.c.b16 %v433, %v432
    %v447 = vpack.c.b16 %v435, %v434
    %v448 = vpack.c.b16 %v437, %v436
    %v449 = vpack.c.b16 %v439, %v438
    %v450 = vpack.c.b16 %v441, %v440
    %v451 = vpack.c.b16 %v443, %v442
    %460 = vmatprep.subr.bf16.mxu0 0
    %461 = vmatpush1.bf16.msra.mxu0 %v407
    %462 = vmatprep.subr.bf16.mxu0 0
    %463 = vmatpush1.bf16.msra.mxu0 %v406
    %464 = vmatprep.subr.bf16.mxu0 0
    %465 = vmatpush1.bf16.msra.mxu0 %v405
    %466 = vmatprep.subr.bf16.mxu0 0
    %467 = vmatpush1.bf16.msra.mxu0 %v404
    %468 = vmatprep.subr.bf16.mxu0 0
    %469 = vmatpush1.bf16.msra.mxu0 %v403
    %470 = vmatprep.subr.bf16.mxu0 0
    %471 = vmatpush1.bf16.msra.mxu0 %v402
    %472 = vmatprep.subr.bf16.mxu0 0
    %473 = vmatpush1.bf16.msra.mxu0 %v401
    %474 = vmatprep.subr.bf16.mxu0 0
    %475 = vmatpush1.bf16.msra.mxu0 %v400
    %476 = vmatprep.subr.bf16.mxu0 0
    %477 = vmatpush2.bf16.msra.mxu0 0
    %478 = vmatprep.subr.bf16.mxu0 0
    %479 = vmatpush2.bf16.msra.mxu0 0
    %480 = vmatprep.subr.bf16.mxu0 0
    %481 = vmatpush2.bf16.msra.mxu0 0
    %482 = vmatprep.subr.bf16.mxu0 0
    %483 = vmatpush2.bf16.msra.mxu0 0
    %484 = vmatprep.subr.bf16.mxu0 0
    %485 = vmatpush2.bf16.msra.mxu0 0
    %486 = vmatprep.subr.bf16.mxu0 0
    %487 = vmatpush2.bf16.msra.mxu0 0
    %488 = vmatprep.subr.bf16.mxu0 0
    %489 = vmatpush2.bf16.msra.mxu0 0
    %490 = vmatprep.subr.bf16.mxu0 0
    %491 = vmatpush2.bf16.msra.mxu0 0
    %492 = vmatprep.mubr.bf16.mxu0 0
    %493 = vmatmul.mubr.bf16.gmra.mxu0 %v444
    %v494 = vpop.f32.mrf.mxu0
    %v495 = vadd.f32 %v411, %v494
    %v496 = vpop.f32.mrf.mxu0
    %v497 = vpop.f32.mrf.mxu0
    %v498 = vadd.f32 %v411, %v497
    %v499 = vpop.f32.mrf.mxu0
    %500 = vmatprep.mubr.bf16.mxu0 0
    %501 = vmatmul.mubr.bf16.gmra.mxu0 %v445
    %v502 = vpop.f32.mrf.mxu0
    %v503 = vadd.f32 %v411, %v502
    %v504 = vpop.f32.mrf.mxu0
    %v505 = vpop.f32.mrf.mxu0
    %v506 = vadd.f32 %v411, %v505
    %v507 = vpop.f32.mrf.mxu0
    %508 = vmatprep.mubr.bf16.mxu0 0
    %509 = vmatmul.mubr.bf16.gmra.mxu0 %v446
    %v510 = vpop.f32.mrf.mxu0
    %v511 = vadd.f32 %v411, %v510
    %v512 = vpop.f32.mrf.mxu0
    %v513 = vpop.f32.mrf.mxu0
    %v514 = vadd.f32 %v411, %v513
    %v515 = vpop.f32.mrf.mxu0
    %516 = vmatprep.mubr.bf16.mxu0 0
    %517 = vmatmul.mubr.bf16.gmra.mxu0 %v447
    %v518 = vpop.f32.mrf.mxu0
    %v519 = vadd.f32 %v411, %v518
    %v520 = vpop.f32.mrf.mxu0
    %v521 = vpop.f32.mrf.mxu0
    %v522 = vadd.f32 %v411, %v521
    %v523 = vpop.f32.mrf.mxu0
    %524 = vmatprep.mubr.bf16.mxu0 0
    %525 = vmatmul.mubr.bf16.gmra.mxu0 %v448
    %v526 = vpop.f32.mrf.mxu0
    %v527 = vadd.f32 %v411, %v526
    %v528 = vpop.f32.mrf.mxu0
    %v529 = vpop.f32.mrf.mxu0
    %v530 = vadd.f32 %v411, %v529
    %v531 = vpop.f32.mrf.mxu0
    %532 = vmatprep.mubr.bf16.mxu0 0
    %533 = vmatmul.mubr.bf16.gmra.mxu0 %v449
    %v534 = vpop.f32.mrf.mxu0
    %v535 = vadd.f32 %v411, %v534
    %v536 = vpop.f32.mrf.mxu0
    %v537 = vpop.f32.mrf.mxu0
    %v538 = vadd.f32 %v411, %v537
    %v539 = vpop.f32.mrf.mxu0
    %540 = vmatprep.mubr.bf16.mxu0 0
    %541 = vmatmul.mubr.bf16.gmra.mxu0 %v450
    %v542 = vpop.f32.mrf.mxu0
    %v543 = vadd.f32 %v411, %v542
    %v544 = vpop.f32.mrf.mxu0
    %v545 = vpop.f32.mrf.mxu0
    %v546 = vadd.f32 %v411, %v545
    %v547 = vpop.f32.mrf.mxu0
    %548 = vmatprep.mubr.bf16.mxu0 0
    %549 = vmatmul.mubr.bf16.gmra.mxu0 %v451
    %v550 = vpop.f32.mrf.mxu0
    %v551 = vadd.f32 %v411, %v550
    %v552 = vpop.f32.mrf.mxu0
    %v553 = vpop.f32.mrf.mxu0
    %v554 = vadd.f32 %v411, %v553
    %v555 = vpop.f32.mrf.mxu0
    %556 = vdwg.mxu0
    %v557 = vmul.f32 %v495, %v159
    %v558 = vmul.f32 %v498, %v160
    %v559 = vmul.f32 %v503, %v161
    %v560 = vmul.f32 %v506, %v162
    %v561 = vmul.f32 %v511, %v163
    %v562 = vmul.f32 %v514, %v164
    %v563 = vmul.f32 %v519, %v165
    %v564 = vmul.f32 %v522, %v166
    %v565 = vmul.f32 %v527, %v167
    %v566 = vmul.f32 %v530, %v168
    %v567 = vmul.f32 %v535, %v169
    %v568 = vmul.f32 %v538, %v170
    %v569 = vmul.f32 %v543, %v171
    %v570 = vmul.f32 %v546, %v172
    %v571 = vmul.f32 %v551, %v173
    %v572 = vmul.f32 %v554, %v174
    %v573 = vadd.f32 %v557, %v558
    %v574 = vadd.f32 %v573, %v559
    %v575 = vadd.f32 %v574, %v560
    %v576 = vadd.f32 %v575, %v561
    %v577 = vadd.f32 %v576, %v562
    %v578 = vadd.f32 %v577, %v563
    %v579 = vadd.f32 %v578, %v564
    %v580 = vadd.f32 %v579, %v565
    %v581 = vadd.f32 %v580, %v566
    %v582 = vadd.f32 %v581, %v567
    %v583 = vadd.f32 %v582, %v568
    %v584 = vadd.f32 %v583, %v569
    %v585 = vadd.f32 %v584, %v570
    %v586 = vadd.f32 %v585, %v571
    %v587 = vadd.f32 %v586, %v572
    %v588 = vrot.slane %v587, 4
    %v589 = vadd.f32 %v587, %v588
    %v590 = vrot.slane %v589, 2
    %v591 = vadd.f32 %v589, %v590
    %v592 = vrot.slane %v591, 1
    %v593 = vadd.f32 %v591, %v592
    %v594 = vmul.f32 %v593, 0.015625
    %v595 = vsub.f32 %v495, %v594
    %v596 = vsub.f32 %v498, %v594
    %v597 = vsub.f32 %v503, %v594
    %v598 = vsub.f32 %v506, %v594
    %v599 = vsub.f32 %v511, %v594
    %v600 = vsub.f32 %v514, %v594
    %v601 = vsub.f32 %v519, %v594
    %v602 = vsub.f32 %v522, %v594
    %v603 = vsub.f32 %v527, %v594
    %v604 = vsub.f32 %v530, %v594
    %v605 = vsub.f32 %v535, %v594
    %v606 = vsub.f32 %v538, %v594
    %v607 = vsub.f32 %v543, %v594
    %v608 = vsub.f32 %v546, %v594
    %v609 = vsub.f32 %v551, %v594
    %v610 = vsub.f32 %v554, %v594
    %v611 = vmul.f32 %v595, %v159
    %v612 = vmul.f32 %v596, %v160
    %v613 = vmul.f32 %v597, %v161
    %v614 = vmul.f32 %v598, %v162
    %v615 = vmul.f32 %v599, %v163
    %v616 = vmul.f32 %v600, %v164
    %v617 = vmul.f32 %v601, %v165
    %v618 = vmul.f32 %v602, %v166
    %v619 = vmul.f32 %v603, %v167
    %v620 = vmul.f32 %v604, %v168
    %v621 = vmul.f32 %v605, %v169
    %v622 = vmul.f32 %v606, %v170
    %v623 = vmul.f32 %v607, %v171
    %v624 = vmul.f32 %v608, %v172
    %v625 = vmul.f32 %v609, %v173
    %v626 = vmul.f32 %v610, %v174
    %v627 = vmul.f32 %v611, %v611
    %v628 = vmul.f32 %v612, %v612
    %v629 = vmul.f32 %v613, %v613
    %v630 = vmul.f32 %v614, %v614
    %v631 = vmul.f32 %v615, %v615
    %v632 = vmul.f32 %v616, %v616
    %v633 = vmul.f32 %v617, %v617
    %v634 = vmul.f32 %v618, %v618
    %v635 = vmul.f32 %v619, %v619
    %v636 = vmul.f32 %v620, %v620
    %v637 = vmul.f32 %v621, %v621
    %v638 = vmul.f32 %v622, %v622
    %v639 = vmul.f32 %v623, %v623
    %v640 = vmul.f32 %v624, %v624
    %v641 = vmul.f32 %v625, %v625
    %v642 = vmul.f32 %v626, %v626
    %v643 = vadd.f32 %v627, %v628
    %v644 = vadd.f32 %v643, %v629
    %v645 = vadd.f32 %v644, %v630
    %v646 = vadd.f32 %v645, %v631
    %v647 = vadd.f32 %v646, %v632
    %v648 = vadd.f32 %v647, %v633
    %v649 = vadd.f32 %v648, %v634
    %v650 = vadd.f32 %v649, %v635
    %v651 = vadd.f32 %v650, %v636
    %v652 = vadd.f32 %v651, %v637
    %v653 = vadd.f32 %v652, %v638
    %v654 = vadd.f32 %v653, %v639
    %v655 = vadd.f32 %v654, %v640
    %v656 = vadd.f32 %v655, %v641
    %v657 = vadd.f32 %v656, %v642
    %v658 = vrot.slane %v657, 4
    %v659 = vadd.f32 %v657, %v658
    %v660 = vrot.slane %v659, 2
    %v661 = vadd.f32 %v659, %v660
    %v662 = vrot.slane %v661, 1
    %v663 = vadd.f32 %v661, %v662
    %v664 = vmul.f32 %v663, 0.015625
    %v665 = vadd.f32 %v664, 1e-05
    %v666 = vrsqrt.pop %v665
    %v667 = vmul.f32 %v109, %v666
    %v668 = vmul.f32 %v594, %v667
    %v670 = vrot.slane %v668, 7
    %v672 = vsub.f32 %v109, %v670
    %v673 = vlaneseq
    %v674 = vshrl.u32 %v673, 7
    %v675 = vsub.s32 1, %v674
    %v676 = vrot.slane %v667, %v675
    %v677 = vmul.f32 %v495, %v676
    %v678 = vmul.f32 %v498, %v676
    %v679 = vmul.f32 %v503, %v676
    %v680 = vmul.f32 %v506, %v676
    %v681 = vmul.f32 %v511, %v676
    %v682 = vmul.f32 %v514, %v676
    %v683 = vmul.f32 %v519, %v676
    %v684 = vmul.f32 %v522, %v676
    %v685 = vmul.f32 %v527, %v676
    %v686 = vmul.f32 %v530, %v676
    %v687 = vmul.f32 %v535, %v676
    %v688 = vmul.f32 %v538, %v676
    %v689 = vmul.f32 %v543, %v676
    %v690 = vmul.f32 %v546, %v676
    %v691 = vmul.f32 %v551, %v676
    %v692 = vmul.f32 %v554, %v676
    %v693 = vlaneseq
    %v694 = vshrl.u32 %v693, 7
    %v695 = vsub.s32 2, %v694
    %v696 = vrot.slane %v672, %v695
    %v697 = vadd.f32 %v677, %v696
    %v698 = vadd.f32 %v678, %v696
    %v699 = vadd.f32 %v679, %v696
    %v700 = vadd.f32 %v680, %v696
    %v701 = vadd.f32 %v681, %v696
    %v702 = vadd.f32 %v682, %v696
    %v703 = vadd.f32 %v683, %v696
    %v704 = vadd.f32 %v684, %v696
    %v705 = vadd.f32 %v685, %v696
    %v706 = vadd.f32 %v686, %v696
    %v707 = vadd.f32 %v687, %v696
    %v708 = vadd.f32 %v688, %v696
    %v709 = vadd.f32 %v689, %v696
    %v710 = vadd.f32 %v690, %v696
    %v711 = vadd.f32 %v691, %v696
    %v712 = vadd.f32 %v692, %v696
    %v713 = vmax.f32 %v697, 0.0
    %v714 = vmax.f32 %v698, 0.0
    %v715 = vmax.f32 %v699, 0.0
    %v716 = vmax.f32 %v700, 0.0
    %v717 = vmax.f32 %v701, 0.0
    %v718 = vmax.f32 %v702, 0.0
    %v719 = vmax.f32 %v703, 0.0
    %v720 = vmax.f32 %v704, 0.0
    %v721 = vmax.f32 %v705, 0.0
    %v722 = vmax.f32 %v706, 0.0
    %v723 = vmax.f32 %v707, 0.0
    %v724 = vmax.f32 %v708, 0.0
    %v725 = vmax.f32 %v709, 0.0
    %v726 = vmax.f32 %v710, 0.0
    %v727 = vmax.f32 %v711, 0.0
    %v728 = vmax.f32 %v712, 0.0
    %v729 = vpack.c.bf16 %v714, %v713
    %v730 = vpack.c.bf16 %v716, %v715
    %v731 = vpack.c.bf16 %v718, %v717
    %v732 = vpack.c.bf16 %v720, %v719
    %v733 = vpack.c.bf16 %v722, %v721
    %v734 = vpack.c.bf16 %v724, %v723
    %v735 = vpack.c.bf16 %v726, %v725
    %v736 = vpack.c.bf16 %v728, %v727
    %v737 = vld [vmem:[#allocation8] sm:$0xf]
    %v738 = vld [vmem:[#allocation8 + $0x4] sm:$0xf]
    %v739 = vld [vmem:[#allocation8 + $0x8] sm:$0xf]
    %v740 = vld [vmem:[#allocation8 + $0xc] sm:$0xf]
    %v741 = vld [vmem:[#allocation8 + $0x10] sm:$0xf]
    %v742 = vld [vmem:[#allocation8 + $0x14] sm:$0xf]
    %v743 = vld [vmem:[#allocation8 + $0x18] sm:$0xf]
    %v744 = vld [vmem:[#allocation8 + $0x1c] sm:$0xf]
    %v745 = vld [vmem:[#allocation8 + $0x20] sm:$0xf]
    %v746 = vld [vmem:[#allocation8 + $0x24] sm:$0xf]
    %v747 = vld [vmem:[#allocation8 + $0x28] sm:$0xf]
    %v748 = vld [vmem:[#allocation8 + $0x2c] sm:$0xf]
    %v749 = vld [vmem:[#allocation8 + $0x30] sm:$0xf]
    %v750 = vld [vmem:[#allocation8 + $0x34] sm:$0xf]
    %v751 = vld [vmem:[#allocation8 + $0x38] sm:$0xf]
    %v752 = vld [vmem:[#allocation8 + $0x3c] sm:$0xf]
    %v769 = vunpack.c.l.b16 %v737
    %v770 = vunpack.c.l.b16 %v738
    %v771 = vunpack.c.l.b16 %v739
    %v772 = vunpack.c.l.b16 %v740
    %v773 = vunpack.c.l.b16 %v741
    %v774 = vunpack.c.l.b16 %v742
    %v775 = vunpack.c.l.b16 %v743
    %v776 = vunpack.c.l.b16 %v744
    %v777 = vunpack.c.l.b16 %v745
    %v778 = vunpack.c.l.b16 %v746
    %v779 = vunpack.c.l.b16 %v747
    %v780 = vunpack.c.l.b16 %v748
    %v781 = vunpack.c.l.b16 %v749
    %v782 = vunpack.c.l.b16 %v750
    %v783 = vunpack.c.l.b16 %v751
    %v784 = vunpack.c.l.b16 %v752
    %v785 = vpack.c.b16 %v770, %v769
    %v786 = vpack.c.b16 %v772, %v771
    %v787 = vpack.c.b16 %v774, %v773
    %v788 = vpack.c.b16 %v776, %v775
    %v789 = vpack.c.b16 %v778, %v777
    %v790 = vpack.c.b16 %v780, %v779
    %v791 = vpack.c.b16 %v782, %v781
    %v792 = vpack.c.b16 %v784, %v783
    %801 = vmatprep.subr.bf16.mxu0 0
    %802 = vmatpush1.bf16.msra.mxu0 %v792
    %803 = vmatprep.subr.bf16.mxu0 0
    %804 = vmatpush1.bf16.msra.mxu0 %v791
    %805 = vmatprep.subr.bf16.mxu0 0
    %806 = vmatpush1.bf16.msra.mxu0 %v790
    %807 = vmatprep.subr.bf16.mxu0 0
    %808 = vmatpush1.bf16.msra.mxu0 %v789
    %809 = vmatprep.subr.bf16.mxu0 0
    %810 = vmatpush1.bf16.msra.mxu0 %v788
    %811 = vmatprep.subr.bf16.mxu0 0
    %812 = vmatpush1.bf16.msra.mxu0 %v787
    %813 = vmatprep.subr.bf16.mxu0 0
    %814 = vmatpush1.bf16.msra.mxu0 %v786
    %815 = vmatprep.subr.bf16.mxu0 0
    %816 = vmatpush1.bf16.msra.mxu0 %v785
    %817 = vmatprep.subr.bf16.mxu0 0
    %818 = vmatpush2.bf16.msra.mxu0 0
    %819 = vmatprep.subr.bf16.mxu0 0
    %820 = vmatpush2.bf16.msra.mxu0 0
    %821 = vmatprep.subr.bf16.mxu0 0
    %822 = vmatpush2.bf16.msra.mxu0 0
    %823 = vmatprep.subr.bf16.mxu0 0
    %824 = vmatpush2.bf16.msra.mxu0 0
    %825 = vmatprep.subr.bf16.mxu0 0
    %826 = vmatpush2.bf16.msra.mxu0 0
    %827 = vmatprep.subr.bf16.mxu0 0
    %828 = vmatpush2.bf16.msra.mxu0 0
    %829 = vmatprep.subr.bf16.mxu0 0
    %830 = vmatpush2.bf16.msra.mxu0 0
    %831 = vmatprep.subr.bf16.mxu0 0
    %832 = vmatpush2.bf16.msra.mxu0 0
    %833 = vmatprep.mubr.bf16.mxu0 0
    %834 = vmatmul.mubr.bf16.gmra.mxu0 %v729
    %v835 = vpop.f32.mrf.mxu0
    %v836 = vadd.f32 0.0, %v835
    %v837 = vpop.f32.mrf.mxu0
    %v838 = vpop.f32.mrf.mxu0
    %v839 = vadd.f32 0.0, %v838
    %v840 = vpop.f32.mrf.mxu0
    %841 = vmatprep.mubr.bf16.mxu0 0
    %842 = vmatmul.mubr.bf16.gmra.mxu0 %v730
    %v843 = vpop.f32.mrf.mxu0
    %v844 = vadd.f32 0.0, %v843
    %v845 = vpop.f32.mrf.mxu0
    %v846 = vpop.f32.mrf.mxu0
    %v847 = vadd.f32 0.0, %v846
    %v848 = vpop.f32.mrf.mxu0
    %849 = vmatprep.mubr.bf16.mxu0 0
    %850 = vmatmul.mubr.bf16.gmra.mxu0 %v731
    %v851 = vpop.f32.mrf.mxu0
    %v852 = vadd.f32 0.0, %v851
    %v853 = vpop.f32.mrf.mxu0
    %v854 = vpop.f32.mrf.mxu0
    %v855 = vadd.f32 0.0, %v854
    %v856 = vpop.f32.mrf.mxu0
    %857 = vmatprep.mubr.bf16.mxu0 0
    %858 = vmatmul.mubr.bf16.gmra.mxu0 %v732
    %v859 = vpop.f32.mrf.mxu0
    %v860 = vadd.f32 0.0, %v859
    %v861 = vpop.f32.mrf.mxu0
    %v862 = vpop.f32.mrf.mxu0
    %v863 = vadd.f32 0.0, %v862
    %v864 = vpop.f32.mrf.mxu0
    %865 = vmatprep.mubr.bf16.mxu0 0
    %866 = vmatmul.mubr.bf16.gmra.mxu0 %v733
    %v867 = vpop.f32.mrf.mxu0
    %v868 = vadd.f32 0.0, %v867
    %v869 = vpop.f32.mrf.mxu0
    %v870 = vpop.f32.mrf.mxu0
    %v871 = vadd.f32 0.0, %v870
    %v872 = vpop.f32.mrf.mxu0
    %873 = vmatprep.mubr.bf16.mxu0 0
    %874 = vmatmul.mubr.bf16.gmra.mxu0 %v734
    %v875 = vpop.f32.mrf.mxu0
    %v876 = vadd.f32 0.0, %v875
    %v877 = vpop.f32.mrf.mxu0
    %v878 = vpop.f32.mrf.mxu0
    %v879 = vadd.f32 0.0, %v878
    %v880 = vpop.f32.mrf.mxu0
    %881 = vmatprep.mubr.bf16.mxu0 0
    %882 = vmatmul.mubr.bf16.gmra.mxu0 %v735
    %v883 = vpop.f32.mrf.mxu0
    %v884 = vadd.f32 0.0, %v883
    %v885 = vpop.f32.mrf.mxu0
    %v886 = vpop.f32.mrf.mxu0
    %v887 = vadd.f32 0.0, %v886
    %v888 = vpop.f32.mrf.mxu0
    %889 = vmatprep.mubr.bf16.mxu0 0
    %890 = vmatmul.mubr.bf16.gmra.mxu0 %v736
    %v891 = vpop.f32.mrf.mxu0
    %v892 = vadd.f32 0.0, %v891
    %v893 = vpop.f32.mrf.mxu0
    %v894 = vpop.f32.mrf.mxu0
    %v895 = vadd.f32 0.0, %v894
    %v896 = vpop.f32.mrf.mxu0
    %897 = vdwg.mxu0
    %v898 = vpack.c.bf16 %v839, %v836
    %v899 = vpack.c.bf16 %v847, %v844
    %v900 = vpack.c.bf16 %v855, %v852
    %v901 = vpack.c.bf16 %v863, %v860
    %v902 = vpack.c.bf16 %v871, %v868
    %v903 = vpack.c.bf16 %v879, %v876
    %v904 = vpack.c.bf16 %v887, %v884
    %v905 = vpack.c.bf16 %v895, %v892
    %v906 = vlaneseq
    %v907 = vshrl.u32 %v906, 7
    %v908 = vsub.s32 3, %v907
    %v909 = vrot.slane %v109, %v908
    %910 = vmatprep.subr.bf16.mxu0 0
    %911 = vmatpush1.bf16.msra.mxu0 %v905
    %912 = vmatprep.subr.bf16.mxu0 0
    %913 = vmatpush1.bf16.msra.mxu0 %v904
    %914 = vmatprep.subr.bf16.mxu0 0
    %915 = vmatpush1.bf16.msra.mxu0 %v903
    %916 = vmatprep.subr.bf16.mxu0 0
    %917 = vmatpush1.bf16.msra.mxu0 %v902
    %918 = vmatprep.subr.bf16.mxu0 0
    %919 = vmatpush1.bf16.msra.mxu0 %v901
    %920 = vmatprep.subr.bf16.mxu0 0
    %921 = vmatpush1.bf16.msra.mxu0 %v900
    %922 = vmatprep.subr.bf16.mxu0 0
    %923 = vmatpush1.bf16.msra.mxu0 %v899
    %924 = vmatprep.subr.bf16.mxu0 0
    %925 = vmatpush1.bf16.msra.mxu0 %v898
    %926 = vmatprep.subr.bf16.mxu0 0
    %927 = vmatpush2.bf16.msra.mxu0 0
    %928 = vmatprep.subr.bf16.mxu0 0
    %929 = vmatpush2.bf16.msra.mxu0 0
    %930 = vmatprep.subr.bf16.mxu0 0
    %931 = vmatpush2.bf16.msra.mxu0 0
    %932 = vmatprep.subr.bf16.mxu0 0
    %933 = vmatpush2.bf16.msra.mxu0 0
    %934 = vmatprep.subr.bf16.mxu0 0
    %935 = vmatpush2.bf16.msra.mxu0 0
    %936 = vmatprep.subr.bf16.mxu0 0
    %937 = vmatpush2.bf16.msra.mxu0 0
    %938 = vmatprep.subr.bf16.mxu0 0
    %939 = vmatpush2.bf16.msra.mxu0 0
    %940 = vmatprep.subr.bf16.mxu0 0
    %941 = vmatpush2.bf16.msra.mxu0 0
    %942 = vmatprep.mubr.bf16.mxu0 0
    %943 = vmatmul.mubr.bf16.gmra.mxu0 %v444
    %v944 = vpop.f32.mrf.mxu0
    %v945 = vadd.f32 %v909, %v944
    %v946 = vpop.f32.mrf.mxu0
    %v947 = vpop.f32.mrf.mxu0
    %v948 = vadd.f32 %v909, %v947
    %v949 = vpop.f32.mrf.mxu0
    %950 = vmatprep.mubr.bf16.mxu0 0
    %951 = vmatmul.mubr.bf16.gmra.mxu0 %v445
    %v952 = vpop.f32.mrf.mxu0
    %v953 = vadd.f32 %v909, %v952
    %v954 = vpop.f32.mrf.mxu0
    %v955 = vpop.f32.mrf.mxu0
    %v956 = vadd.f32 %v909, %v955
    %v957 = vpop.f32.mrf.mxu0
    %958 = vmatprep.mubr.bf16.mxu0 0
    %959 = vmatmul.mubr.bf16.gmra.mxu0 %v446
    %v960 = vpop.f32.mrf.mxu0
    %v961 = vadd.f32 %v909, %v960
    %v962 = vpop.f32.mrf.mxu0
    %v963 = vpop.f32.mrf.mxu0
    %v964 = vadd.f32 %v909, %v963
    %v965 = vpop.f32.mrf.mxu0
    %966 = vmatprep.mubr.bf16.mxu0 0
    %967 = vmatmul.mubr.bf16.gmra.mxu0 %v447
    %v968 = vpop.f32.mrf.mxu0
    %v969 = vadd.f32 %v909, %v968
    %v970 = vpop.f32.mrf.mxu0
    %v971 = vpop.f32.mrf.mxu0
    %v972 = vadd.f32 %v909, %v971
    %v973 = vpop.f32.mrf.mxu0
    %974 = vmatprep.mubr.bf16.mxu0 0
    %975 = vmatmul.mubr.bf16.gmra.mxu0 %v448
    %v976 = vpop.f32.mrf.mxu0
    %v977 = vadd.f32 %v909, %v976
    %v978 = vpop.f32.mrf.mxu0
    %v979 = vpop.f32.mrf.mxu0
    %v980 = vadd.f32 %v909, %v979
    %v981 = vpop.f32.mrf.mxu0
    %982 = vmatprep.mubr.bf16.mxu0 0
    %983 = vmatmul.mubr.bf16.gmra.mxu0 %v449
    %v984 = vpop.f32.mrf.mxu0
    %v985 = vadd.f32 %v909, %v984
    %v986 = vpop.f32.mrf.mxu0
    %v987 = vpop.f32.mrf.mxu0
    %v988 = vadd.f32 %v909, %v987
    %v989 = vpop.f32.mrf.mxu0
    %990 = vmatprep.mubr.bf16.mxu0 0
    %991 = vmatmul.mubr.bf16.gmra.mxu0 %v450
    %v992 = vpop.f32.mrf.mxu0
    %v993 = vadd.f32 %v909, %v992
    %v994 = vpop.f32.mrf.mxu0
    %v995 = vpop.f32.mrf.mxu0
    %v996 = vadd.f32 %v909, %v995
    %v997 = vpop.f32.mrf.mxu0
    %998 = vmatprep.mubr.bf16.mxu0 0
    %999 = vmatmul.mubr.bf16.gmra.mxu0 %v451
    %v1000 = vpop.f32.mrf.mxu0
    %v1001 = vadd.f32 %v909, %v1000
    %v1002 = vpop.f32.mrf.mxu0
    %v1003 = vpop.f32.mrf.mxu0
    %v1004 = vadd.f32 %v909, %v1003
    %v1005 = vpop.f32.mrf.mxu0
    %1006 = vdwg.mxu0
    %v1007 = vmul.f32 %v945, %v159
    %v1008 = vmul.f32 %v948, %v160
    %v1009 = vmul.f32 %v953, %v161
    %v1010 = vmul.f32 %v956, %v162
    %v1011 = vmul.f32 %v961, %v163
    %v1012 = vmul.f32 %v964, %v164
    %v1013 = vmul.f32 %v969, %v165
    %v1014 = vmul.f32 %v972, %v166
    %v1015 = vmul.f32 %v977, %v167
    %v1016 = vmul.f32 %v980, %v168
    %v1017 = vmul.f32 %v985, %v169
    %v1018 = vmul.f32 %v988, %v170
    %v1019 = vmul.f32 %v993, %v171
    %v1020 = vmul.f32 %v996, %v172
    %v1021 = vmul.f32 %v1001, %v173
    %v1022 = vmul.f32 %v1004, %v174
    %v1023 = vadd.f32 %v1007, %v1008
    %v1024 = vadd.f32 %v1023, %v1009
    %v1025 = vadd.f32 %v1024, %v1010
    %v1026 = vadd.f32 %v1025, %v1011
    %v1027 = vadd.f32 %v1026, %v1012
    %v1028 = vadd.f32 %v1027, %v1013
    %v1029 = vadd.f32 %v1028, %v1014
    %v1030 = vadd.f32 %v1029, %v1015
    %v1031 = vadd.f32 %v1030, %v1016
    %v1032 = vadd.f32 %v1031, %v1017
    %v1033 = vadd.f32 %v1032, %v1018
    %v1034 = vadd.f32 %v1033, %v1019
    %v1035 = vadd.f32 %v1034, %v1020
    %v1036 = vadd.f32 %v1035, %v1021
    %v1037 = vadd.f32 %v1036, %v1022
    %v1038 = vrot.slane %v1037, 4
    %v1039 = vadd.f32 %v1037, %v1038
    %v1040 = vrot.slane %v1039, 2
    %v1041 = vadd.f32 %v1039, %v1040
    %v1042 = vrot.slane %v1041, 1
    %v1043 = vadd.f32 %v1041, %v1042
    %v1044 = vmul.f32 %v1043, 0.015625
    %v1045 = vsub.f32 %v945, %v1044
    %v1046 = vsub.f32 %v948, %v1044
    %v1047 = vsub.f32 %v953, %v1044
    %v1048 = vsub.f32 %v956, %v1044
    %v1049 = vsub.f32 %v961, %v1044
    %v1050 = vsub.f32 %v964, %v1044
    %v1051 = vsub.f32 %v969, %v1044
    %v1052 = vsub.f32 %v972, %v1044
    %v1053 = vsub.f32 %v977, %v1044
    %v1054 = vsub.f32 %v980, %v1044
    %v1055 = vsub.f32 %v985, %v1044
    %v1056 = vsub.f32 %v988, %v1044
    %v1057 = vsub.f32 %v993, %v1044
    %v1058 = vsub.f32 %v996, %v1044
    %v1059 = vsub.f32 %v1001, %v1044
    %v1060 = vsub.f32 %v1004, %v1044
    %v1061 = vmul.f32 %v1045, %v159
    %v1062 = vmul.f32 %v1046, %v160
    %v1063 = vmul.f32 %v1047, %v161
    %v1064 = vmul.f32 %v1048, %v162
    %v1065 = vmul.f32 %v1049, %v163
    %v1066 = vmul.f32 %v1050, %v164
    %v1067 = vmul.f32 %v1051, %v165
    %v1068 = vmul.f32 %v1052, %v166
    %v1069 = vmul.f32 %v1053, %v167
    %v1070 = vmul.f32 %v1054, %v168
    %v1071 = vmul.f32 %v1055, %v169
    %v1072 = vmul.f32 %v1056, %v170
    %v1073 = vmul.f32 %v1057, %v171
    %v1074 = vmul.f32 %v1058, %v172
    %v1075 = vmul.f32 %v1059, %v173
    %v1076 = vmul.f32 %v1060, %v174
    %v1077 = vmul.f32 %v1061, %v1061
    %v1078 = vmul.f32 %v1062, %v1062
    %v1079 = vmul.f32 %v1063, %v1063
    %v1080 = vmul.f32 %v1064, %v1064
    %v1081 = vmul.f32 %v1065, %v1065
    %v1082 = vmul.f32 %v1066, %v1066
    %v1083 = vmul.f32 %v1067, %v1067
    %v1084 = vmul.f32 %v1068, %v1068
    %v1085 = vmul.f32 %v1069, %v1069
    %v1086 = vmul.f32 %v1070, %v1070
    %v1087 = vmul.f32 %v1071, %v1071
    %v1088 = vmul.f32 %v1072, %v1072
    %v1089 = vmul.f32 %v1073, %v1073
    %v1090 = vmul.f32 %v1074, %v1074
    %v1091 = vmul.f32 %v1075, %v1075
    %v1092 = vmul.f32 %v1076, %v1076
    %v1093 = vadd.f32 %v1077, %v1078
    %v1094 = vadd.f32 %v1093, %v1079
    %v1095 = vadd.f32 %v1094, %v1080
    %v1096 = vadd.f32 %v1095, %v1081
    %v1097 = vadd.f32 %v1096, %v1082
    %v1098 = vadd.f32 %v1097, %v1083
    %v1099 = vadd.f32 %v1098, %v1084
    %v1100 = vadd.f32 %v1099, %v1085
    %v1101 = vadd.f32 %v1100, %v1086
    %v1102 = vadd.f32 %v1101, %v1087
    %v1103 = vadd.f32 %v1102, %v1088
    %v1104 = vadd.f32 %v1103, %v1089
    %v1105 = vadd.f32 %v1104, %v1090
    %v1106 = vadd.f32 %v1105, %v1091
    %v1107 = vadd.f32 %v1106, %v1092
    %v1108 = vrot.slane %v1107, 4
    %v1109 = vadd.f32 %v1107, %v1108
    %v1110 = vrot.slane %v1109, 2
    %v1111 = vadd.f32 %v1109, %v1110
    %v1112 = vrot.slane %v1111, 1
    %v1113 = vadd.f32 %v1111, %v1112
    %v1114 = vmul.f32 %v1113, 0.015625
    %v1115 = vadd.f32 %v1114, 1e-05
    %v1116 = vrsqrt.pop %v1115
    %v1117 = vmul.f32 %v109, %v1116
    %v1118 = vmul.f32 %v1044, %v1117
    %v1120 = vrot.slane %v1118, 7
    %v1122 = vsub.f32 %v109, %v1120
    %v1123 = vlaneseq
    %v1124 = vshrl.u32 %v1123, 7
    %v1125 = vsub.s32 4, %v1124
    %v1126 = vrot.slane %v1117, %v1125
    %v1127 = vmul.f32 %v945, %v1126
    %v1128 = vmul.f32 %v948, %v1126
    %v1129 = vmul.f32 %v953, %v1126
    %v1130 = vmul.f32 %v956, %v1126
    %v1131 = vmul.f32 %v961, %v1126
    %v1132 = vmul.f32 %v964, %v1126
    %v1133 = vmul.f32 %v969, %v1126
    %v1134 = vmul.f32 %v972, %v1126
    %v1135 = vmul.f32 %v977, %v1126
    %v1136 = vmul.f32 %v980, %v1126
    %v1137 = vmul.f32 %v985, %v1126
    %v1138 = vmul.f32 %v988, %v1126
    %v1139 = vmul.f32 %v993, %v1126
    %v1140 = vmul.f32 %v996, %v1126
    %v1141 = vmul.f32 %v1001, %v1126
    %v1142 = vmul.f32 %v1004, %v1126
    %v1143 = vlaneseq
    %v1144 = vshrl.u32 %v1143, 7
    %v1145 = vsub.s32 5, %v1144
    %v1146 = vrot.slane %v1122, %v1145
    %v1147 = vadd.f32 %v1127, %v1146
    %v1148 = vadd.f32 %v1128, %v1146
    %v1149 = vadd.f32 %v1129, %v1146
    %v1150 = vadd.f32 %v1130, %v1146
    %v1151 = vadd.f32 %v1131, %v1146
    %v1152 = vadd.f32 %v1132, %v1146
    %v1153 = vadd.f32 %v1133, %v1146
    %v1154 = vadd.f32 %v1134, %v1146
    %v1155 = vadd.f32 %v1135, %v1146
    %v1156 = vadd.f32 %v1136, %v1146
    %v1157 = vadd.f32 %v1137, %v1146
    %v1158 = vadd.f32 %v1138, %v1146
    %v1159 = vadd.f32 %v1139, %v1146
    %v1160 = vadd.f32 %v1140, %v1146
    %v1161 = vadd.f32 %v1141, %v1146
    %v1162 = vadd.f32 %v1142, %v1146
    %v1163 = vmax.f32 %v1147, 0.0
    %v1164 = vmax.f32 %v1148, 0.0
    %v1165 = vmax.f32 %v1149, 0.0
    %v1166 = vmax.f32 %v1150, 0.0
    %v1167 = vmax.f32 %v1151, 0.0
    %v1168 = vmax.f32 %v1152, 0.0
    %v1169 = vmax.f32 %v1153, 0.0
    %v1170 = vmax.f32 %v1154, 0.0
    %v1171 = vmax.f32 %v1155, 0.0
    %v1172 = vmax.f32 %v1156, 0.0
    %v1173 = vmax.f32 %v1157, 0.0
    %v1174 = vmax.f32 %v1158, 0.0
    %v1175 = vmax.f32 %v1159, 0.0
    %v1176 = vmax.f32 %v1160, 0.0
    %v1177 = vmax.f32 %v1161, 0.0
    %v1178 = vmax.f32 %v1162, 0.0
    %v1179 = vpack.c.bf16 %v1164, %v1163
    %v1180 = vpack.c.bf16 %v1166, %v1165
    %v1181 = vpack.c.bf16 %v1168, %v1167
    %v1182 = vpack.c.bf16 %v1170, %v1169
    %v1183 = vpack.c.bf16 %v1172, %v1171
    %v1184 = vpack.c.bf16 %v1174, %v1173
    %v1185 = vpack.c.bf16 %v1176, %v1175
    %v1186 = vpack.c.bf16 %v1178, %v1177
    %v1187 = vld [vmem:[#allocation10] sm:$0xf]
    %v1188 = vld [vmem:[#allocation10 + $0x4] sm:$0xf]
    %v1189 = vld [vmem:[#allocation10 + $0x8] sm:$0xf]
    %v1190 = vld [vmem:[#allocation10 + $0xc] sm:$0xf]
    %v1191 = vld [vmem:[#allocation10 + $0x10] sm:$0xf]
    %v1192 = vld [vmem:[#allocation10 + $0x14] sm:$0xf]
    %v1193 = vld [vmem:[#allocation10 + $0x18] sm:$0xf]
    %v1194 = vld [vmem:[#allocation10 + $0x1c] sm:$0xf]
    %v1195 = vld [vmem:[#allocation10 + $0x20] sm:$0xf]
    %v1196 = vld [vmem:[#allocation10 + $0x24] sm:$0xf]
    %v1197 = vld [vmem:[#allocation10 + $0x28] sm:$0xf]
    %v1198 = vld [vmem:[#allocation10 + $0x2c] sm:$0xf]
    %v1199 = vld [vmem:[#allocation10 + $0x30] sm:$0xf]
    %v1200 = vld [vmem:[#allocation10 + $0x34] sm:$0xf]
    %v1201 = vld [vmem:[#allocation10 + $0x38] sm:$0xf]
    %v1202 = vld [vmem:[#allocation10 + $0x3c] sm:$0xf]
    %v1219 = vunpack.c.l.b16 %v1187
    %v1220 = vunpack.c.l.b16 %v1188
    %v1221 = vunpack.c.l.b16 %v1189
    %v1222 = vunpack.c.l.b16 %v1190
    %v1223 = vunpack.c.l.b16 %v1191
    %v1224 = vunpack.c.l.b16 %v1192
    %v1225 = vunpack.c.l.b16 %v1193
    %v1226 = vunpack.c.l.b16 %v1194
    %v1227 = vunpack.c.l.b16 %v1195
    %v1228 = vunpack.c.l.b16 %v1196
    %v1229 = vunpack.c.l.b16 %v1197
    %v1230 = vunpack.c.l.b16 %v1198
    %v1231 = vunpack.c.l.b16 %v1199
    %v1232 = vunpack.c.l.b16 %v1200
    %v1233 = vunpack.c.l.b16 %v1201
    %v1234 = vunpack.c.l.b16 %v1202
    %v1235 = vpack.c.b16 %v1220, %v1219
    %v1236 = vpack.c.b16 %v1222, %v1221
    %v1237 = vpack.c.b16 %v1224, %v1223
    %v1238 = vpack.c.b16 %v1226, %v1225
    %v1239 = vpack.c.b16 %v1228, %v1227
    %v1240 = vpack.c.b16 %v1230, %v1229
    %v1241 = vpack.c.b16 %v1232, %v1231
    %v1242 = vpack.c.b16 %v1234, %v1233
    %1251 = vmatprep.subr.bf16.mxu0 0
    %1252 = vmatpush1.bf16.msra.mxu0 %v1242
    %1253 = vmatprep.subr.bf16.mxu0 0
    %1254 = vmatpush1.bf16.msra.mxu0 %v1241
    %1255 = vmatprep.subr.bf16.mxu0 0
    %1256 = vmatpush1.bf16.msra.mxu0 %v1240
    %1257 = vmatprep.subr.bf16.mxu0 0
    %1258 = vmatpush1.bf16.msra.mxu0 %v1239
    %1259 = vmatprep.subr.bf16.mxu0 0
    %1260 = vmatpush1.bf16.msra.mxu0 %v1238
    %1261 = vmatprep.subr.bf16.mxu0 0
    %1262 = vmatpush1.bf16.msra.mxu0 %v1237
    %1263 = vmatprep.subr.bf16.mxu0 0
    %1264 = vmatpush1.bf16.msra.mxu0 %v1236
    %1265 = vmatprep.subr.bf16.mxu0 0
    %1266 = vmatpush1.bf16.msra.mxu0 %v1235
    %1267 = vmatprep.subr.bf16.mxu0 0
    %1268 = vmatpush2.bf16.msra.mxu0 0
    %1269 = vmatprep.subr.bf16.mxu0 0
    %1270 = vmatpush2.bf16.msra.mxu0 0
    %1271 = vmatprep.subr.bf16.mxu0 0
    %1272 = vmatpush2.bf16.msra.mxu0 0
    %1273 = vmatprep.subr.bf16.mxu0 0
    %1274 = vmatpush2.bf16.msra.mxu0 0
    %1275 = vmatprep.subr.bf16.mxu0 0
    %1276 = vmatpush2.bf16.msra.mxu0 0
    %1277 = vmatprep.subr.bf16.mxu0 0
    %1278 = vmatpush2.bf16.msra.mxu0 0
    %1279 = vmatprep.subr.bf16.mxu0 0
    %1280 = vmatpush2.bf16.msra.mxu0 0
    %1281 = vmatprep.subr.bf16.mxu0 0
    %1282 = vmatpush2.bf16.msra.mxu0 0
    %1283 = vmatprep.mubr.bf16.mxu0 0
    %1284 = vmatmul.mubr.bf16.gmra.mxu0 %v1179
    %v1285 = vpop.f32.mrf.mxu0
    %v1286 = vadd.f32 0.0, %v1285
    %v1287 = vpop.f32.mrf.mxu0
    %v1288 = vpop.f32.mrf.mxu0
    %v1289 = vadd.f32 0.0, %v1288
    %v1290 = vpop.f32.mrf.mxu0
    %1291 = vmatprep.mubr.bf16.mxu0 0
    %1292 = vmatmul.mubr.bf16.gmra.mxu0 %v1180
    %v1293 = vpop.f32.mrf.mxu0
    %v1294 = vadd.f32 0.0, %v1293
    %v1295 = vpop.f32.mrf.mxu0
    %v1296 = vpop.f32.mrf.mxu0
    %v1297 = vadd.f32 0.0, %v1296
    %v1298 = vpop.f32.mrf.mxu0
    %1299 = vmatprep.mubr.bf16.mxu0 0
    %1300 = vmatmul.mubr.bf16.gmra.mxu0 %v1181
    %v1301 = vpop.f32.mrf.mxu0
    %v1302 = vadd.f32 0.0, %v1301
    %v1303 = vpop.f32.mrf.mxu0
    %v1304 = vpop.f32.mrf.mxu0
    %v1305 = vadd.f32 0.0, %v1304
    %v1306 = vpop.f32.mrf.mxu0
    %1307 = vmatprep.mubr.bf16.mxu0 0
    %1308 = vmatmul.mubr.bf16.gmra.mxu0 %v1182
    %v1309 = vpop.f32.mrf.mxu0
    %v1310 = vadd.f32 0.0, %v1309
    %v1311 = vpop.f32.mrf.mxu0
    %v1312 = vpop.f32.mrf.mxu0
    %v1313 = vadd.f32 0.0, %v1312
    %v1314 = vpop.f32.mrf.mxu0
    %1315 = vmatprep.mubr.bf16.mxu0 0
    %1316 = vmatmul.mubr.bf16.gmra.mxu0 %v1183
    %v1317 = vpop.f32.mrf.mxu0
    %v1318 = vadd.f32 0.0, %v1317
    %v1319 = vpop.f32.mrf.mxu0
    %v1320 = vpop.f32.mrf.mxu0
    %v1321 = vadd.f32 0.0, %v1320
    %v1322 = vpop.f32.mrf.mxu0
    %1323 = vmatprep.mubr.bf16.mxu0 0
    %1324 = vmatmul.mubr.bf16.gmra.mxu0 %v1184
    %v1325 = vpop.f32.mrf.mxu0
    %v1326 = vadd.f32 0.0, %v1325
    %v1327 = vpop.f32.mrf.mxu0
    %v1328 = vpop.f32.mrf.mxu0
    %v1329 = vadd.f32 0.0, %v1328
    %v1330 = vpop.f32.mrf.mxu0
    %1331 = vmatprep.mubr.bf16.mxu0 0
    %1332 = vmatmul.mubr.bf16.gmra.mxu0 %v1185
    %v1333 = vpop.f32.mrf.mxu0
    %v1334 = vadd.f32 0.0, %v1333
    %v1335 = vpop.f32.mrf.mxu0
    %v1336 = vpop.f32.mrf.mxu0
    %v1337 = vadd.f32 0.0, %v1336
    %v1338 = vpop.f32.mrf.mxu0
    %1339 = vmatprep.mubr.bf16.mxu0 0
    %1340 = vmatmul.mubr.bf16.gmra.mxu0 %v1186
    %v1341 = vpop.f32.mrf.mxu0
    %v1342 = vadd.f32 0.0, %v1341
    %v1343 = vpop.f32.mrf.mxu0
    %v1344 = vpop.f32.mrf.mxu0
    %v1345 = vadd.f32 0.0, %v1344
    %v1346 = vpop.f32.mrf.mxu0
    %1347 = vdwg.mxu0
    %v1348 = vpack.c.bf16 %v1289, %v1286
    %v1349 = vpack.c.bf16 %v1297, %v1294
    %v1350 = vpack.c.bf16 %v1305, %v1302
    %v1351 = vpack.c.bf16 %v1313, %v1310
    %v1352 = vpack.c.bf16 %v1321, %v1318
    %v1353 = vpack.c.bf16 %v1329, %v1326
    %v1354 = vpack.c.bf16 %v1337, %v1334
    %v1355 = vpack.c.bf16 %v1345, %v1342
    %v1356 = vlaneseq
    %v1357 = vshrl.u32 %v1356, 7
    %v1358 = vsub.s32 6, %v1357
    %v1359 = vrot.slane %v109, %v1358
    %1360 = vmatprep.subr.bf16.mxu0 0
    %1361 = vmatpush1.bf16.msra.mxu0 %v1355
    %1362 = vmatprep.subr.bf16.mxu0 0
    %1363 = vmatpush1.bf16.msra.mxu0 %v1354
    %1364 = vmatprep.subr.bf16.mxu0 0
    %1365 = vmatpush1.bf16.msra.mxu0 %v1353
    %1366 = vmatprep.subr.bf16.mxu0 0
    %1367 = vmatpush1.bf16.msra.mxu0 %v1352
    %1368 = vmatprep.subr.bf16.mxu0 0
    %1369 = vmatpush1.bf16.msra.mxu0 %v1351
    %1370 = vmatprep.subr.bf16.mxu0 0
    %1371 = vmatpush1.bf16.msra.mxu0 %v1350
    %1372 = vmatprep.subr.bf16.mxu0 0
    %1373 = vmatpush1.bf16.msra.mxu0 %v1349
    %1374 = vmatprep.subr.bf16.mxu0 0
    %1375 = vmatpush1.bf16.msra.mxu0 %v1348
    %1376 = vmatprep.subr.bf16.mxu0 0
    %1377 = vmatpush2.bf16.msra.mxu0 0
    %1378 = vmatprep.subr.bf16.mxu0 0
    %1379 = vmatpush2.bf16.msra.mxu0 0
    %1380 = vmatprep.subr.bf16.mxu0 0
    %1381 = vmatpush2.bf16.msra.mxu0 0
    %1382 = vmatprep.subr.bf16.mxu0 0
    %1383 = vmatpush2.bf16.msra.mxu0 0
    %1384 = vmatprep.subr.bf16.mxu0 0
    %1385 = vmatpush2.bf16.msra.mxu0 0
    %1386 = vmatprep.subr.bf16.mxu0 0
    %1387 = vmatpush2.bf16.msra.mxu0 0
    %1388 = vmatprep.subr.bf16.mxu0 0
    %1389 = vmatpush2.bf16.msra.mxu0 0
    %1390 = vmatprep.subr.bf16.mxu0 0
    %1391 = vmatpush2.bf16.msra.mxu0 0
    %1392 = vmatprep.mubr.bf16.mxu0 0
    %1393 = vmatmul.mubr.bf16.gmra.mxu0 %v444
    %v1394 = vpop.f32.mrf.mxu0
    %v1395 = vadd.f32 %v1359, %v1394
    %v1396 = vpop.f32.mrf.mxu0
    %v1397 = vpop.f32.mrf.mxu0
    %v1398 = vadd.f32 %v1359, %v1397
    %v1399 = vpop.f32.mrf.mxu0
    %1400 = vmatprep.mubr.bf16.mxu0 0
    %1401 = vmatmul.mubr.bf16.gmra.mxu0 %v445
    %v1402 = vpop.f32.mrf.mxu0
    %v1403 = vadd.f32 %v1359, %v1402
    %v1404 = vpop.f32.mrf.mxu0
    %v1405 = vpop.f32.mrf.mxu0
    %v1406 = vadd.f32 %v1359, %v1405
    %v1407 = vpop.f32.mrf.mxu0
    %1408 = vmatprep.mubr.bf16.mxu0 0
    %1409 = vmatmul.mubr.bf16.gmra.mxu0 %v446
    %v1410 = vpop.f32.mrf.mxu0
    %v1411 = vadd.f32 %v1359, %v1410
    %v1412 = vpop.f32.mrf.mxu0
    %v1413 = vpop.f32.mrf.mxu0
    %v1414 = vadd.f32 %v1359, %v1413
    %v1415 = vpop.f32.mrf.mxu0
    %1416 = vmatprep.mubr.bf16.mxu0 0
    %1417 = vmatmul.mubr.bf16.gmra.mxu0 %v447
    %v1418 = vpop.f32.mrf.mxu0
    %v1419 = vadd.f32 %v1359, %v1418
    %v1420 = vpop.f32.mrf.mxu0
    %v1421 = vpop.f32.mrf.mxu0
    %v1422 = vadd.f32 %v1359, %v1421
    %v1423 = vpop.f32.mrf.mxu0
    %1424 = vmatprep.mubr.bf16.mxu0 0
    %1425 = vmatmul.mubr.bf16.gmra.mxu0 %v448
    %v1426 = vpop.f32.mrf.mxu0
    %v1427 = vadd.f32 %v1359, %v1426
    %v1428 = vpop.f32.mrf.mxu0
    %v1429 = vpop.f32.mrf.mxu0
    %v1430 = vadd.f32 %v1359, %v1429
    %v1431 = vpop.f32.mrf.mxu0
    %1432 = vmatprep.mubr.bf16.mxu0 0
    %1433 = vmatmul.mubr.bf16.gmra.mxu0 %v449
    %v1434 = vpop.f32.mrf.mxu0
    %v1435 = vadd.f32 %v1359, %v1434
    %v1436 = vpop.f32.mrf.mxu0
    %v1437 = vpop.f32.mrf.mxu0
    %v1438 = vadd.f32 %v1359, %v1437
    %v1439 = vpop.f32.mrf.mxu0
    %1440 = vmatprep.mubr.bf16.mxu0 0
    %1441 = vmatmul.mubr.bf16.gmra.mxu0 %v450
    %v1442 = vpop.f32.mrf.mxu0
    %v1443 = vadd.f32 %v1359, %v1442
    %v1444 = vpop.f32.mrf.mxu0
    %v1445 = vpop.f32.mrf.mxu0
    %v1446 = vadd.f32 %v1359, %v1445
    %v1447 = vpop.f32.mrf.mxu0
    %1448 = vmatprep.mubr.bf16.mxu0 0
    %1449 = vmatmul.mubr.bf16.gmra.mxu0 %v451
    %v1450 = vpop.f32.mrf.mxu0
    %v1451 = vadd.f32 %v1359, %v1450
    %v1452 = vpop.f32.mrf.mxu0
    %v1453 = vpop.f32.mrf.mxu0
    %v1454 = vadd.f32 %v1359, %v1453
    %v1455 = vpop.f32.mrf.mxu0
    %1456 = vdwg.mxu0
    %1457 = vst [vmem:[#allocation11] sm:$0xff] %v1395
    %1458 = vst [vmem:[#allocation11 + $0x8] sm:$0xff] %v1398
    %1459 = vst [vmem:[#allocation11 + $0x10] sm:$0xff] %v1403
    %1460 = vst [vmem:[#allocation11 + $0x18] sm:$0xff] %v1406
    %1461 = vst [vmem:[#allocation11 + $0x20] sm:$0xff] %v1411
    %1462 = vst [vmem:[#allocation11 + $0x28] sm:$0xff] %v1414
    %1463 = vst [vmem:[#allocation11 + $0x30] sm:$0xff] %v1419
    %1464 = vst [vmem:[#allocation11 + $0x38] sm:$0xff] %v1422
    %1465 = vst [vmem:[#allocation11 + $0x40] sm:$0xff] %v1427
    %1466 = vst [vmem:[#allocation11 + $0x48] sm:$0xff] %v1430
    %1467 = vst [vmem:[#allocation11 + $0x50] sm:$0xff] %v1435
    %1468 = vst [vmem:[#allocation11 + $0x58] sm:$0xff] %v1438
    %1469 = vst [vmem:[#allocation11 + $0x60] sm:$0xff] %v1443
    %1470 = vst [vmem:[#allocation11 + $0x68] sm:$0xff] %v1446
    %1471 = vst [vmem:[#allocation11 + $0x70] sm:$0xff] %v1451
    %1472 = vst [vmem:[#allocation11 + $0x78] sm:$0xff] %v1454
    // Predicated region
    $region46: #{tpu_custom_call.1} parent=1 // pred_check
      _
    $region47: #{tpu_custom_call.1} parent=1 // pred_check_branch
      %1474 = sbr.rel (0) target = $region49
    $region48: #{tpu_custom_call.1} parent=1 // pred_region
      %s1476 = ssub.s32 2048, 2048
      %1477 = vsyncadd [#allocation4], %s1476
      %s1478 = sshll.u32 [#allocation11], 4
      %s1479 = int_to_ptr.vmem [resolvable:$true] %s1478
      %1484 = dma.vmem_to_hbm [thread:$0]  %s1479, 2048, %s6, [#allocation4], 128, 128, 8
    $region49: #{tpu_custom_call.1} parent=1 // pred_fallthru
      _
    // Predicated region
    $region50: #{tpu_custom_call.1} parent=1 // pred_check
      _
    $region51: #{tpu_custom_call.1} parent=1 // pred_check_branch
      %1486 = sbr.rel (0) target = $region53
    $region52: #{tpu_custom_call.1} parent=1 // pred_region
      %1487 = dma.done [#allocation4], 2048
    $region53: #{tpu_custom_call.1} parent=1 // pred_fallthru
      _
    %1488 = vsyncpa [#allocation3], 1
    %1489 = vsyncpa [#allocation6], 1
    %1490 = vsyncpa [#allocation9], 1
    %1491 = vsyncpa [#allocation4], 1

</llo_original>
